<compile_context>
chip_gen: v7x
topology: tpu7x:2x2x1
jax: 0.10.0
libtpu: 0.0.40
codegen_flags: <defaults>
</compile_context>

<pallas_src>
import functools

import jax
import jax.numpy as jnp
import numpy as np
from jax.experimental import pallas as pl
from jax.experimental.pallas import tpu as pltpu


def _softplus_torch(x):
    # Matches torch.nn.functional.softplus(x, beta=1, threshold=20)
    return jnp.where(x > 20.0, x, jnp.log1p(jnp.exp(jnp.minimum(x, 20.0))))


def _round_up(n, m):
    return ((n + m - 1) // m) * m


# --------------------------------------------------------------------------- #
# Kernel
# --------------------------------------------------------------------------- #
def _plan_recognition_kernel(
    x_ref,           # (T, BB, D)   f32, time-major, batch padded to sublane multiple
    w0_in_ref,       # (D, 2H)      fused layer-0 input proj  [fwd | bwd]
    b0_in_ref,       # (1, 2H)      fused b_ih + b_hh          [fwd | bwd]
    w_hh0_bd_ref,    # (2H, 2H)     block-diag [W_hh0_f.T, W_hh0_b.T]
    w1f_in_ref,      # (2H, H)      = W_ih1_fwd.T
    b1f_ref,         # (1, H)       = b_ih1_f + b_hh1_f
    w1b_in_ref,      # (2H, H)      = W_ih1_bwd.T
    b1b_ref,         # (1, H)       = b_ih1_b + b_hh1_b
    w_hh1f_ref,      # (H, H)       = W_hh1_fwd.T
    w_head_f_ref,    # (H, 2*Lp)    fused [mean | var] head rows fed by h1_fwd
    w_head_b_ref,    # (H, 2*Lp)    fused [mean | var] head rows fed by h1_bwd
    b_head_ref,      # (1, 2*Lp)
    mean_ref,        # (BB, Lp)
    std_ref,         # (BB, Lp)
    *,
    hidden_dim: int,
    lp: int,
    min_std: float,
):
    H = hidden_dim
    x = x_ref[...]                                   # (T, BB, D), already f32
    T, BB, D = x.shape

    # ---- layer 0: time-invariant input projection as one slab matmul -------- #
    pre0 = (
        jnp.dot(x.reshape(T * BB, D), w0_in_ref[...],
                preferred_element_type=jnp.float32)
        + b0_in_ref[...]
    ).reshape(T, BB, 2 * H)        # [t, :, :H] = fwd pre(t), [t, :, H:] = bwd pre(t)

    # ---- layer 0: merged fwd/bwd recurrence (block-diagonal W_hh) ------------ #
    lane = jax.lax.broadcasted_iota(jnp.int32, (BB, 2 * H), 1)
    is_fwd = lane < H                                # first H lanes: fwd half
    w_hh0 = w_hh0_bd_ref[...]

    h_cat = jnp.zeros((BB, 2 * H), jnp.float32)
    steps = [None] * T                               # steps[s] = [h_f(s), h_b(T-1-s)]
    for s in range(T):                               # T static -> unrolled
        pre_s = jnp.where(is_fwd, pre0[s], pre0[T - 1 - s])
        h_cat = jnp.maximum(
            jnp.dot(h_cat, w_hh0, preferred_element_type=jnp.float32) + pre_s,
            0.0,
        )
        steps[s] = h_cat

    # Realign the bwd half to output-time order: out0[t] = [h_f(t), h_b(t)]
    out0 = [jnp.where(is_fwd, steps[t], steps[T - 1 - t]) for t in range(T)]

    # ---- layer 1: hoisted input projection (fwd direction, all timesteps) --- #
    out0_all = jnp.concatenate([o[None] for o in out0], axis=0)    # (T, BB, 2H)
    pre1_f = (
        jnp.dot(out0_all.reshape(T * BB, 2 * H), w1f_in_ref[...],
                preferred_element_type=jnp.float32)
        + b1f_ref[...]
    ).reshape(T, BB, H)

    # layer-1 forward recurrence: only its final hidden state is needed
    w_hh1f = w_hh1f_ref[...]
    h1f = jnp.zeros((BB, H), jnp.float32)
    for t in range(T):
        h1f = jnp.maximum(
            jnp.dot(h1f, w_hh1f, preferred_element_type=jnp.float32) + pre1_f[t],
            0.0,
        )

    # layer-1 backward output at t = T-1 is one step from zero hidden
    # (no W_hh1_bwd matmul needed at all)
    h1b = jnp.maximum(
        jnp.dot(out0[T - 1], w1b_in_ref[...], preferred_element_type=jnp.float32)
        + b1b_ref[...],
        0.0,
    )

    # ---- fused mean/var head (split weight rows: avoids concat(h1f, h1b)) --- #
    head = (
        jnp.dot(h1f, w_head_f_ref[...], preferred_element_type=jnp.float32)
        + jnp.dot(h1b, w_head_b_ref[...], preferred_element_type=jnp.float32)
        + b_head_ref[...]
    )                                                 # (BB, 2*Lp)
    mean = head[:, :lp]                               # clean 128-lane boundary split
    std = _softplus_torch(head[:, lp:]) + jnp.float32(min_std)

    mean_ref[...] = mean.astype(mean_ref.dtype)
    std_ref[...] = std.astype(std_ref.dtype)


# --------------------------------------------------------------------------- #
# Host-side parameter re-layout (free "layout plumbing")
# --------------------------------------------------------------------------- #
def prepare_params(params, lane_pad=128):
    f32 = jnp.float32
    H = params["w_hh0"].shape[-1]
    L = params["w_mean"].shape[0]
    Lp = _round_up(L, lane_pad)

    w_ih0_f, w_ih0_b = params["w_ih0"][0], params["w_ih0"][1]
    w_hh0_f, w_hh0_b = params["w_hh0"][0], params["w_hh0"][1]
    b0_f = params["b_ih0"][0] + params["b_hh0"][0]
    b0_b = params["b_ih0"][1] + params["b_hh0"][1]

    # layer 0: fused input projection and block-diagonal hidden->hidden weight
    w0_in = jnp.concatenate([w_ih0_f.T, w_ih0_b.T], axis=1).astype(f32)   # (D, 2H)
    b0_in = jnp.concatenate([b0_f, b0_b])[None, :].astype(f32)            # (1, 2H)
    z = jnp.zeros((H, H), f32)
    w_hh0_bd = jnp.concatenate(
        [jnp.concatenate([w_hh0_f.T.astype(f32), z], axis=1),
         jnp.concatenate([z, w_hh0_b.T.astype(f32)], axis=1)], axis=0)    # (2H, 2H)

    # layer 1: pre-transposed input projections, fused biases
    w1f_in = params["w_ih1"][0].T.astype(f32)                             # (2H, H)
    w1b_in = params["w_ih1"][1].T.astype(f32)                             # (2H, H)
    b1f = (params["b_ih1"][0] + params["b_hh1"][0])[None, :].astype(f32)  # (1, H)
    b1b = (params["b_ih1"][1] + params["b_hh1"][1])[None, :].astype(f32)  # (1, H)
    w_hh1f = params["w_hh1"][0].T.astype(f32)                             # (H, H)

    # fused, lane-padded [mean | var] head; rows split by fwd/bwd half of `last`
    w_head = jnp.zeros((2 * H, 2 * Lp), f32)
    w_head = w_head.at[:, :L].set(params["w_mean"].T.astype(f32))
    w_head = w_head.at[:, Lp:Lp + L].set(params["w_var"].T.astype(f32))
    b_head = jnp.zeros((1, 2 * Lp), f32)
    b_head = b_head.at[0, :L].set(params["b_mean"].reshape(-1).astype(f32))
    b_head = b_head.at[0, Lp:Lp + L].set(params["b_var"].reshape(-1).astype(f32))

    return dict(
        w0_in=w0_in, b0_in=b0_in, w_hh0_bd=w_hh0_bd,
        w1f_in=w1f_in, b1f=b1f, w1b_in=w1b_in, b1b=b1b,
        w_hh1f=w_hh1f,
        w_head_f=w_head[:H], w_head_b=w_head[H:], b_head=b_head,
        hidden_dim=H, latent_dim=L, lane_padded_latent=Lp,
    )


def _full_spec(shape):
    nd = len(shape)
    return pl.BlockSpec(shape, lambda i, _nd=nd: (0,) * _nd)


# --------------------------------------------------------------------------- #
# Wrapper
# --------------------------------------------------------------------------- #
def plan_recognition_forward(x, params, min_std):
    """x: (B, T, state_dim) float32. Returns (mean, std), each (B, latent_plan_dim)."""
    prep = prepare_params(params)
    H = prep["hidden_dim"]
    L = prep["latent_dim"]
    Lp = prep["lane_padded_latent"]
    B, T, D = x.shape

    # pad batch to a sublane multiple; pick batch block for the (parallel) grid
    Bp8 = _round_up(B, 8)
    BB = min(Bp8, 128)
    Bp = _round_up(Bp8, BB)

    # time-major, f32, zero-padded batch
    x_t = jnp.transpose(x.astype(jnp.float32), (1, 0, 2))       # (T, B, D)
    x_t = jnp.pad(x_t, ((0, 0), (0, Bp - B), (0, 0)))           # (T, Bp, D)

    weights = (
        prep["w0_in"], prep["b0_in"], prep["w_hh0_bd"],
        prep["w1f_in"], prep["b1f"], prep["w1b_in"], prep["b1b"],
        prep["w_hh1f"],
        prep["w_head_f"], prep["w_head_b"], prep["b_head"],
    )

    kernel = functools.partial(
        _plan_recognition_kernel, hidden_dim=H, lp=Lp, min_std=float(min_std)
    )

    mean_p, std_p = pl.pallas_call(
        kernel,
        grid=(Bp // BB,),
        in_specs=[pl.BlockSpec((T, BB, D), lambda i: (0, i, 0))]
        + [_full_spec(w.shape) for w in weights],
        out_specs=(
            pl.BlockSpec((BB, Lp), lambda i: (i, 0)),
            pl.BlockSpec((BB, Lp), lambda i: (i, 0)),
        ),
        out_shape=(
            jax.ShapeDtypeStruct((Bp, Lp), jnp.float32),
            jax.ShapeDtypeStruct((Bp, Lp), jnp.float32),
        ),
        compiler_params=pltpu.CompilerParams(dimension_semantics=("parallel",)),
    )(x_t, *weights)

    return mean_p[:B, :L], std_p[:B, :L]


# --------------------------------------------------------------------------- #
# Synthetic parameters (PyTorch nn.RNN / nn.Linear layouts) and pure-JAX reference
# --------------------------------------------------------------------------- #
def init_params(state_dim, hidden_dim, latent_plan_dim, seed=0):
    key = jax.random.PRNGKey(seed)
    ks = jax.random.split(key, 12)
    H, D, L = hidden_dim, state_dim, latent_plan_dim
    k_rnn = 1.0 / np.sqrt(H)
    k_fc = 1.0 / np.sqrt(2 * H)

    def u(k, shape, bound):
        return jax.random.uniform(k, shape, jnp.float32, -bound, bound)

    return {
        "w_ih0": u(ks[0], (2, H, D), k_rnn),
        "w_hh0": u(ks[1], (2, H, H), k_rnn),
        "b_ih0": u(ks[2], (2, H), k_rnn),
        "b_hh0": u(ks[3], (2, H), k_rnn),
        "w_ih1": u(ks[4], (2, H, 2 * H), k_rnn),
        "w_hh1": u(ks[5], (2, H, H), k_rnn),
        "b_ih1": u(ks[6], (2, H), k_rnn),
        "b_hh1": u(ks[7], (2, H), k_rnn),
        "w_mean": u(ks[8], (L, 2 * H), k_fc),
        "b_mean": u(ks[9], (1, L), k_fc),
        "w_var": u(ks[10], (L, 2 * H), k_fc),
        "b_var": u(ks[11], (1, L), k_fc),
    }


def _reference_forward(x, params, min_std):
    """Pure-JAX reference mirroring the PyTorch module (eval mode)."""
    hp = jax.lax.Precision.HIGHEST
    x = x.astype(jnp.float32)
    B, T, _ = x.shape
    H = params["w_hh0"].shape[-1]

    def cell(inp, h, w_ih, w_hh, b_ih, b_hh):
        return jnp.maximum(
            jnp.dot(inp, w_ih.T, precision=hp) + b_ih
            + jnp.dot(h, w_hh.T, precision=hp) + b_hh, 0.0)

    def run(inp, w_ih, w_hh, b_ih, b_hh, reverse):
        h = jnp.zeros((B, H), jnp.float32)
        outs = [None] * T
        order = range(T - 1, -1, -1) if reverse else range(T)
        for t in order:
            h = cell(inp[:, t], h, w_ih, w_hh, b_ih, b_hh)
            outs[t] = h
        return outs

    o0f = run(x, params["w_ih0"][0], params["w_hh0"][0],
              params["b_ih0"][0], params["b_hh0"][0], False)
    o0b = run(x, params["w_ih0"][1], params["w_hh0"][1],
              params["b_ih0"][1], params["b_hh0"][1], True)
    inp1 = jnp.stack([jnp.concatenate([o0f[t], o0b[t]], -1) for t in range(T)], 1)
    o1f = run(inp1, params["w_ih1"][0], params["w_hh1"][0],
              params["b_ih1"][0], params["b_hh1"][0], False)
    o1b = run(inp1, params["w_ih1"][1], params["w_hh1"][1],
              params["b_ih1"][1], params["b_hh1"][1], True)
    last = jnp.concatenate([o1f[T - 1], o1b[T - 1]], -1)
    mean = jnp.dot(last, params["w_mean"].T, precision=hp) + params["b_mean"].reshape(-1)
    var = jnp.dot(last, params["w_var"].T, precision=hp) + params["b_var"].reshape(-1)
    return mean, _softplus_torch(var) + min_std


if __name__ == "__main__":
    batch, seq_len = 2, 8
    state_dim, hidden_dim, latent_plan_dim = 16, 32, 8
    min_std = 1e-4

    params = init_params(state_dim, hidden_dim, latent_plan_dim, seed=0)
    x = jax.random.normal(
        jax.random.PRNGKey(0), (batch, seq_len, state_dim), dtype=jnp.float32
    )

    mean, std = plan_recognition_forward(x, params, min_std)
    jax.block_until_ready((mean, std))

    assert mean.shape == (batch, latent_plan_dim)
    assert std.shape == (batch, latent_plan_dim)
    assert bool(jnp.all(std > 0.0))

    mean_ref, std_ref = _reference_forward(x, params, min_std)
    assert bool(jnp.allclose(mean, mean_ref, atol=5e-2, rtol=5e-2))
    assert bool(jnp.allclose(std, std_ref, atol=5e-2, rtol=5e-2))

    print("KERNEL_OK")
</pallas_src>

<mosaic_0001>
module attributes {stable_mosaic.version = 11 : i64} {
  func.func @_plan_recognition_kernel(%arg0: i32, %arg1: memref<8x8x16xf32, #tpu.memory_space<vmem>>, %arg2: memref<16x64xf32, #tpu.memory_space<vmem>>, %arg3: memref<1x64xf32, #tpu.memory_space<vmem>>, %arg4: memref<64x64xf32, #tpu.memory_space<vmem>>, %arg5: memref<64x32xf32, #tpu.memory_space<vmem>>, %arg6: memref<1x32xf32, #tpu.memory_space<vmem>>, %arg7: memref<64x32xf32, #tpu.memory_space<vmem>>, %arg8: memref<1x32xf32, #tpu.memory_space<vmem>>, %arg9: memref<32x32xf32, #tpu.memory_space<vmem>>, %arg10: memref<32x256xf32, #tpu.memory_space<vmem>>, %arg11: memref<32x256xf32, #tpu.memory_space<vmem>>, %arg12: memref<1x256xf32, #tpu.memory_space<vmem>>, %arg13: memref<8x128xf32, #tpu.memory_space<vmem>>, %arg14: memref<8x128xf32, #tpu.memory_space<vmem>>) attributes {dimension_semantics = [#tpu.dimension_semantics<parallel>], iteration_bounds = array<i64: 1>, scalar_prefetch = 0 : i64, scratch_operands = 0 : i64, tpu.core_type = #tpu.core_type<tc>, window_params = [{transform_indices = @transform_0, window_bounds = array<i64: 8, 8, 16>}, {pipeline_mode = #tpu.pipeline_mode<synchronous>, transform_indices = @transform_1, window_bounds = array<i64: 16, 64>}, {pipeline_mode = #tpu.pipeline_mode<synchronous>, transform_indices = @transform_2, window_bounds = array<i64: 1, 64>}, {pipeline_mode = #tpu.pipeline_mode<synchronous>, transform_indices = @transform_3, window_bounds = array<i64: 64, 64>}, {pipeline_mode = #tpu.pipeline_mode<synchronous>, transform_indices = @transform_4, window_bounds = array<i64: 64, 32>}, {pipeline_mode = #tpu.pipeline_mode<synchronous>, transform_indices = @transform_5, window_bounds = array<i64: 1, 32>}, {pipeline_mode = #tpu.pipeline_mode<synchronous>, transform_indices = @transform_6, window_bounds = array<i64: 64, 32>}, {pipeline_mode = #tpu.pipeline_mode<synchronous>, transform_indices = @transform_7, window_bounds = array<i64: 1, 32>}, {pipeline_mode = #tpu.pipeline_mode<synchronous>, transform_indices = @transform_8, window_bounds = array<i64: 32, 32>}, {pipeline_mode = #tpu.pipeline_mode<synchronous>, transform_indices = @transform_9, window_bounds = array<i64: 32, 256>}, {pipeline_mode = #tpu.pipeline_mode<synchronous>, transform_indices = @transform_10, window_bounds = array<i64: 32, 256>}, {pipeline_mode = #tpu.pipeline_mode<synchronous>, transform_indices = @transform_11, window_bounds = array<i64: 1, 256>}, {transform_indices = @transform_12, window_bounds = array<i64: 8, 128>}, {transform_indices = @transform_13, window_bounds = array<i64: 8, 128>}]} {
    %c0 = arith.constant 0 : index
    %c0_0 = arith.constant 0 : index
    %c0_1 = arith.constant 0 : index
    %0 = vector.load %arg1[%c0, %c0_0, %c0_1] : memref<8x8x16xf32, #tpu.memory_space<vmem>>, vector<8x8x16xf32>
    %1 = vector.shape_cast %0 : vector<8x8x16xf32> to vector<64x16xf32>
    %c0_2 = arith.constant 0 : index
    %c0_3 = arith.constant 0 : index
    %2 = vector.load %arg2[%c0_2, %c0_3] : memref<16x64xf32, #tpu.memory_space<vmem>>, vector<16x64xf32>
    %cst = arith.constant dense<0.000000e+00> : vector<64x64xf32>
    %3 = tpu.matmul %1, %2, %cst {dimension_numbers = #tpu.dot_dimension_numbers<[1], [0], [0], [1], [0, 0, 1, 1], [], []>} : vector<64x16xf32>, vector<16x64xf32>, vector<64x64xf32> -> vector<64x64xf32>
    %c0_4 = arith.constant 0 : index
    %c0_5 = arith.constant 0 : index
    %4 = vector.load %arg3[%c0_4, %c0_5] : memref<1x64xf32, #tpu.memory_space<vmem>>, vector<1x64xf32>
    %5 = vector.broadcast %4 : vector<1x64xf32> to vector<64x64xf32>
    %6 = arith.addf %3, %5 : vector<64x64xf32>
    %7 = vector.shape_cast %6 : vector<64x64xf32> to vector<8x8x64xf32>
    %8 = tpu.iota {dimensions = array<i32: 1>} : vector<8x64xi32>
    %c32_i32 = arith.constant 32 : i32
    %9 = vector.broadcast %c32_i32 : i32 to vector<8x64xi32>
    %10 = arith.cmpi slt, %8, %9 : vector<8x64xi32>
    %c0_6 = arith.constant 0 : index
    %c0_7 = arith.constant 0 : index
    %11 = vector.load %arg4[%c0_6, %c0_7] : memref<64x64xf32, #tpu.memory_space<vmem>>, vector<64x64xf32>
    %cst_8 = arith.constant 0.000000e+00 : f32
    %12 = vector.broadcast %cst_8 : f32 to vector<8x64xf32>
    %13 = vector.extract_strided_slice %7 {offsets = [0, 0, 0], sizes = [1, 8, 64], strides = [1, 1, 1]} : vector<8x8x64xf32> to vector<1x8x64xf32>
    %14 = vector.shape_cast %13 : vector<1x8x64xf32> to vector<8x64xf32>
    %15 = vector.extract_strided_slice %7 {offsets = [7, 0, 0], sizes = [1, 8, 64], strides = [1, 1, 1]} : vector<8x8x64xf32> to vector<1x8x64xf32>
    %16 = vector.shape_cast %15 : vector<1x8x64xf32> to vector<8x64xf32>
    %17 = arith.select %10, %14, %16 : vector<8x64xi1>, vector<8x64xf32>
    %cst_9 = arith.constant dense<0.000000e+00> : vector<8x64xf32>
    %18 = tpu.matmul %12, %11, %cst_9 {dimension_numbers = #tpu.dot_dimension_numbers<[1], [0], [0], [1], [0, 0, 1, 1], [], []>} : vector<8x64xf32>, vector<64x64xf32>, vector<8x64xf32> -> vector<8x64xf32>
    %19 = arith.addf %18, %17 : vector<8x64xf32>
    %cst_10 = arith.constant 0.000000e+00 : f32
    %20 = vector.broadcast %cst_10 : f32 to vector<8x64xf32>
    %21 = arith.maximumf %19, %20 : vector<8x64xf32>
    %22 = vector.extract_strided_slice %7 {offsets = [1, 0, 0], sizes = [1, 8, 64], strides = [1, 1, 1]} : vector<8x8x64xf32> to vector<1x8x64xf32>
    %23 = vector.shape_cast %22 : vector<1x8x64xf32> to vector<8x64xf32>
    %24 = vector.extract_strided_slice %7 {offsets = [6, 0, 0], sizes = [1, 8, 64], strides = [1, 1, 1]} : vector<8x8x64xf32> to vector<1x8x64xf32>
    %25 = vector.shape_cast %24 : vector<1x8x64xf32> to vector<8x64xf32>
    %26 = arith.select %10, %23, %25 : vector<8x64xi1>, vector<8x64xf32>
    %cst_11 = arith.constant dense<0.000000e+00> : vector<8x64xf32>
    %27 = tpu.matmul %21, %11, %cst_11 {dimension_numbers = #tpu.dot_dimension_numbers<[1], [0], [0], [1], [0, 0, 1, 1], [], []>} : vector<8x64xf32>, vector<64x64xf32>, vector<8x64xf32> -> vector<8x64xf32>
    %28 = arith.addf %27, %26 : vector<8x64xf32>
    %cst_12 = arith.constant 0.000000e+00 : f32
    %29 = vector.broadcast %cst_12 : f32 to vector<8x64xf32>
    %30 = arith.maximumf %28, %29 : vector<8x64xf32>
    %31 = vector.extract_strided_slice %7 {offsets = [2, 0, 0], sizes = [1, 8, 64], strides = [1, 1, 1]} : vector<8x8x64xf32> to vector<1x8x64xf32>
    %32 = vector.shape_cast %31 : vector<1x8x64xf32> to vector<8x64xf32>
    %33 = vector.extract_strided_slice %7 {offsets = [5, 0, 0], sizes = [1, 8, 64], strides = [1, 1, 1]} : vector<8x8x64xf32> to vector<1x8x64xf32>
    %34 = vector.shape_cast %33 : vector<1x8x64xf32> to vector<8x64xf32>
    %35 = arith.select %10, %32, %34 : vector<8x64xi1>, vector<8x64xf32>
    %cst_13 = arith.constant dense<0.000000e+00> : vector<8x64xf32>
    %36 = tpu.matmul %30, %11, %cst_13 {dimension_numbers = #tpu.dot_dimension_numbers<[1], [0], [0], [1], [0, 0, 1, 1], [], []>} : vector<8x64xf32>, vector<64x64xf32>, vector<8x64xf32> -> vector<8x64xf32>
    %37 = arith.addf %36, %35 : vector<8x64xf32>
    %cst_14 = arith.constant 0.000000e+00 : f32
    %38 = vector.broadcast %cst_14 : f32 to vector<8x64xf32>
    %39 = arith.maximumf %37, %38 : vector<8x64xf32>
    %40 = vector.extract_strided_slice %7 {offsets = [3, 0, 0], sizes = [1, 8, 64], strides = [1, 1, 1]} : vector<8x8x64xf32> to vector<1x8x64xf32>
    %41 = vector.shape_cast %40 : vector<1x8x64xf32> to vector<8x64xf32>
    %42 = vector.extract_strided_slice %7 {offsets = [4, 0, 0], sizes = [1, 8, 64], strides = [1, 1, 1]} : vector<8x8x64xf32> to vector<1x8x64xf32>
    %43 = vector.shape_cast %42 : vector<1x8x64xf32> to vector<8x64xf32>
    %44 = arith.select %10, %41, %43 : vector<8x64xi1>, vector<8x64xf32>
    %cst_15 = arith.constant dense<0.000000e+00> : vector<8x64xf32>
    %45 = tpu.matmul %39, %11, %cst_15 {dimension_numbers = #tpu.dot_dimension_numbers<[1], [0], [0], [1], [0, 0, 1, 1], [], []>} : vector<8x64xf32>, vector<64x64xf32>, vector<8x64xf32> -> vector<8x64xf32>
    %46 = arith.addf %45, %44 : vector<8x64xf32>
    %cst_16 = arith.constant 0.000000e+00 : f32
    %47 = vector.broadcast %cst_16 : f32 to vector<8x64xf32>
    %48 = arith.maximumf %46, %47 : vector<8x64xf32>
    %49 = vector.extract_strided_slice %7 {offsets = [4, 0, 0], sizes = [1, 8, 64], strides = [1, 1, 1]} : vector<8x8x64xf32> to vector<1x8x64xf32>
    %50 = vector.shape_cast %49 : vector<1x8x64xf32> to vector<8x64xf32>
    %51 = vector.extract_strided_slice %7 {offsets = [3, 0, 0], sizes = [1, 8, 64], strides = [1, 1, 1]} : vector<8x8x64xf32> to vector<1x8x64xf32>
    %52 = vector.shape_cast %51 : vector<1x8x64xf32> to vector<8x64xf32>
    %53 = arith.select %10, %50, %52 : vector<8x64xi1>, vector<8x64xf32>
    %cst_17 = arith.constant dense<0.000000e+00> : vector<8x64xf32>
    %54 = tpu.matmul %48, %11, %cst_17 {dimension_numbers = #tpu.dot_dimension_numbers<[1], [0], [0], [1], [0, 0, 1, 1], [], []>} : vector<8x64xf32>, vector<64x64xf32>, vector<8x64xf32> -> vector<8x64xf32>
    %55 = arith.addf %54, %53 : vector<8x64xf32>
    %cst_18 = arith.constant 0.000000e+00 : f32
    %56 = vector.broadcast %cst_18 : f32 to vector<8x64xf32>
    %57 = arith.maximumf %55, %56 : vector<8x64xf32>
    %58 = vector.extract_strided_slice %7 {offsets = [5, 0, 0], sizes = [1, 8, 64], strides = [1, 1, 1]} : vector<8x8x64xf32> to vector<1x8x64xf32>
    %59 = vector.shape_cast %58 : vector<1x8x64xf32> to vector<8x64xf32>
    %60 = vector.extract_strided_slice %7 {offsets = [2, 0, 0], sizes = [1, 8, 64], strides = [1, 1, 1]} : vector<8x8x64xf32> to vector<1x8x64xf32>
    %61 = vector.shape_cast %60 : vector<1x8x64xf32> to vector<8x64xf32>
    %62 = arith.select %10, %59, %61 : vector<8x64xi1>, vector<8x64xf32>
    %cst_19 = arith.constant dense<0.000000e+00> : vector<8x64xf32>
    %63 = tpu.matmul %57, %11, %cst_19 {dimension_numbers = #tpu.dot_dimension_numbers<[1], [0], [0], [1], [0, 0, 1, 1], [], []>} : vector<8x64xf32>, vector<64x64xf32>, vector<8x64xf32> -> vector<8x64xf32>
    %64 = arith.addf %63, %62 : vector<8x64xf32>
    %cst_20 = arith.constant 0.000000e+00 : f32
    %65 = vector.broadcast %cst_20 : f32 to vector<8x64xf32>
    %66 = arith.maximumf %64, %65 : vector<8x64xf32>
    %67 = vector.extract_strided_slice %7 {offsets = [6, 0, 0], sizes = [1, 8, 64], strides = [1, 1, 1]} : vector<8x8x64xf32> to vector<1x8x64xf32>
    %68 = vector.shape_cast %67 : vector<1x8x64xf32> to vector<8x64xf32>
    %69 = vector.extract_strided_slice %7 {offsets = [1, 0, 0], sizes = [1, 8, 64], strides = [1, 1, 1]} : vector<8x8x64xf32> to vector<1x8x64xf32>
    %70 = vector.shape_cast %69 : vector<1x8x64xf32> to vector<8x64xf32>
    %71 = arith.select %10, %68, %70 : vector<8x64xi1>, vector<8x64xf32>
    %cst_21 = arith.constant dense<0.000000e+00> : vector<8x64xf32>
    %72 = tpu.matmul %66, %11, %cst_21 {dimension_numbers = #tpu.dot_dimension_numbers<[1], [0], [0], [1], [0, 0, 1, 1], [], []>} : vector<8x64xf32>, vector<64x64xf32>, vector<8x64xf32> -> vector<8x64xf32>
    %73 = arith.addf %72, %71 : vector<8x64xf32>
    %cst_22 = arith.constant 0.000000e+00 : f32
    %74 = vector.broadcast %cst_22 : f32 to vector<8x64xf32>
    %75 = arith.maximumf %73, %74 : vector<8x64xf32>
    %76 = vector.extract_strided_slice %7 {offsets = [7, 0, 0], sizes = [1, 8, 64], strides = [1, 1, 1]} : vector<8x8x64xf32> to vector<1x8x64xf32>
    %77 = vector.shape_cast %76 : vector<1x8x64xf32> to vector<8x64xf32>
    %78 = vector.extract_strided_slice %7 {offsets = [0, 0, 0], sizes = [1, 8, 64], strides = [1, 1, 1]} : vector<8x8x64xf32> to vector<1x8x64xf32>
    %79 = vector.shape_cast %78 : vector<1x8x64xf32> to vector<8x64xf32>
    %80 = arith.select %10, %77, %79 : vector<8x64xi1>, vector<8x64xf32>
    %cst_23 = arith.constant dense<0.000000e+00> : vector<8x64xf32>
    %81 = tpu.matmul %75, %11, %cst_23 {dimension_numbers = #tpu.dot_dimension_numbers<[1], [0], [0], [1], [0, 0, 1, 1], [], []>} : vector<8x64xf32>, vector<64x64xf32>, vector<8x64xf32> -> vector<8x64xf32>
    %82 = arith.addf %81, %80 : vector<8x64xf32>
    %cst_24 = arith.constant 0.000000e+00 : f32
    %83 = vector.broadcast %cst_24 : f32 to vector<8x64xf32>
    %84 = arith.maximumf %82, %83 : vector<8x64xf32>
    %85 = arith.select %10, %21, %84 : vector<8x64xi1>, vector<8x64xf32>
    %86 = arith.select %10, %30, %75 : vector<8x64xi1>, vector<8x64xf32>
    %87 = arith.select %10, %39, %66 : vector<8x64xi1>, vector<8x64xf32>
    %88 = arith.select %10, %48, %57 : vector<8x64xi1>, vector<8x64xf32>
    %89 = arith.select %10, %57, %48 : vector<8x64xi1>, vector<8x64xf32>
    %90 = arith.select %10, %66, %39 : vector<8x64xi1>, vector<8x64xf32>
    %91 = arith.select %10, %75, %30 : vector<8x64xi1>, vector<8x64xf32>
    %92 = arith.select %10, %84, %21 : vector<8x64xi1>, vector<8x64xf32>
    %93 = vector.shape_cast %85 : vector<8x64xf32> to vector<1x8x64xf32>
    %94 = vector.shape_cast %86 : vector<8x64xf32> to vector<1x8x64xf32>
    %95 = vector.shape_cast %87 : vector<8x64xf32> to vector<1x8x64xf32>
    %96 = vector.shape_cast %88 : vector<8x64xf32> to vector<1x8x64xf32>
    %97 = vector.shape_cast %89 : vector<8x64xf32> to vector<1x8x64xf32>
    %98 = vector.shape_cast %90 : vector<8x64xf32> to vector<1x8x64xf32>
    %99 = vector.shape_cast %91 : vector<8x64xf32> to vector<1x8x64xf32>
    %100 = vector.shape_cast %92 : vector<8x64xf32> to vector<1x8x64xf32>
    %101 = tpu.concatenate %93, %94, %95, %96, %97, %98, %99, %100 in 0 : vector<1x8x64xf32>, vector<1x8x64xf32>, vector<1x8x64xf32>, vector<1x8x64xf32>, vector<1x8x64xf32>, vector<1x8x64xf32>, vector<1x8x64xf32>, vector<1x8x64xf32> -> vector<8x8x64xf32>
    %102 = vector.shape_cast %101 : vector<8x8x64xf32> to vector<64x64xf32>
    %c0_25 = arith.constant 0 : index
    %c0_26 = arith.constant 0 : index
    %103 = vector.load %arg5[%c0_25, %c0_26] : memref<64x32xf32, #tpu.memory_space<vmem>>, vector<64x32xf32>
    %cst_27 = arith.constant dense<0.000000e+00> : vector<64x32xf32>
    %104 = tpu.matmul %102, %103, %cst_27 {dimension_numbers = #tpu.dot_dimension_numbers<[1], [0], [0], [1], [0, 0, 1, 1], [], []>} : vector<64x64xf32>, vector<64x32xf32>, vector<64x32xf32> -> vector<64x32xf32>
    %c0_28 = arith.constant 0 : index
    %c0_29 = arith.constant 0 : index
    %105 = vector.load %arg6[%c0_28, %c0_29] : memref<1x32xf32, #tpu.memory_space<vmem>>, vector<1x32xf32>
    %106 = vector.broadcast %105 : vector<1x32xf32> to vector<64x32xf32>
    %107 = arith.addf %104, %106 : vector<64x32xf32>
    %108 = vector.shape_cast %107 : vector<64x32xf32> to vector<8x8x32xf32>
    %c0_30 = arith.constant 0 : index
    %c0_31 = arith.constant 0 : index
    %109 = vector.load %arg9[%c0_30, %c0_31] : memref<32x32xf32, #tpu.memory_space<vmem>>, vector<32x32xf32>
    %cst_32 = arith.constant 0.000000e+00 : f32
    %110 = vector.broadcast %cst_32 : f32 to vector<8x32xf32>
    %cst_33 = arith.constant dense<0.000000e+00> : vector<8x32xf32>
    %111 = tpu.matmul %110, %109, %cst_33 {dimension_numbers = #tpu.dot_dimension_numbers<[1], [0], [0], [1], [0, 0, 1, 1], [], []>} : vector<8x32xf32>, vector<32x32xf32>, vector<8x32xf32> -> vector<8x32xf32>
    %112 = vector.extract_strided_slice %108 {offsets = [0, 0, 0], sizes = [1, 8, 32], strides = [1, 1, 1]} : vector<8x8x32xf32> to vector<1x8x32xf32>
    %113 = vector.shape_cast %112 : vector<1x8x32xf32> to vector<8x32xf32>
    %114 = arith.addf %111, %113 : vector<8x32xf32>
    %cst_34 = arith.constant 0.000000e+00 : f32
    %115 = vector.broadcast %cst_34 : f32 to vector<8x32xf32>
    %116 = arith.maximumf %114, %115 : vector<8x32xf32>
    %cst_35 = arith.constant dense<0.000000e+00> : vector<8x32xf32>
    %117 = tpu.matmul %116, %109, %cst_35 {dimension_numbers = #tpu.dot_dimension_numbers<[1], [0], [0], [1], [0, 0, 1, 1], [], []>} : vector<8x32xf32>, vector<32x32xf32>, vector<8x32xf32> -> vector<8x32xf32>
    %118 = vector.extract_strided_slice %108 {offsets = [1, 0, 0], sizes = [1, 8, 32], strides = [1, 1, 1]} : vector<8x8x32xf32> to vector<1x8x32xf32>
    %119 = vector.shape_cast %118 : vector<1x8x32xf32> to vector<8x32xf32>
    %120 = arith.addf %117, %119 : vector<8x32xf32>
    %cst_36 = arith.constant 0.000000e+00 : f32
    %121 = vector.broadcast %cst_36 : f32 to vector<8x32xf32>
    %122 = arith.maximumf %120, %121 : vector<8x32xf32>
    %cst_37 = arith.constant dense<0.000000e+00> : vector<8x32xf32>
    %123 = tpu.matmul %122, %109, %cst_37 {dimension_numbers = #tpu.dot_dimension_numbers<[1], [0], [0], [1], [0, 0, 1, 1], [], []>} : vector<8x32xf32>, vector<32x32xf32>, vector<8x32xf32> -> vector<8x32xf32>
    %124 = vector.extract_strided_slice %108 {offsets = [2, 0, 0], sizes = [1, 8, 32], strides = [1, 1, 1]} : vector<8x8x32xf32> to vector<1x8x32xf32>
    %125 = vector.shape_cast %124 : vector<1x8x32xf32> to vector<8x32xf32>
    %126 = arith.addf %123, %125 : vector<8x32xf32>
    %cst_38 = arith.constant 0.000000e+00 : f32
    %127 = vector.broadcast %cst_38 : f32 to vector<8x32xf32>
    %128 = arith.maximumf %126, %127 : vector<8x32xf32>
    %cst_39 = arith.constant dense<0.000000e+00> : vector<8x32xf32>
    %129 = tpu.matmul %128, %109, %cst_39 {dimension_numbers = #tpu.dot_dimension_numbers<[1], [0], [0], [1], [0, 0, 1, 1], [], []>} : vector<8x32xf32>, vector<32x32xf32>, vector<8x32xf32> -> vector<8x32xf32>
    %130 = vector.extract_strided_slice %108 {offsets = [3, 0, 0], sizes = [1, 8, 32], strides = [1, 1, 1]} : vector<8x8x32xf32> to vector<1x8x32xf32>
    %131 = vector.shape_cast %130 : vector<1x8x32xf32> to vector<8x32xf32>
    %132 = arith.addf %129, %131 : vector<8x32xf32>
    %cst_40 = arith.constant 0.000000e+00 : f32
    %133 = vector.broadcast %cst_40 : f32 to vector<8x32xf32>
    %134 = arith.maximumf %132, %133 : vector<8x32xf32>
    %cst_41 = arith.constant dense<0.000000e+00> : vector<8x32xf32>
    %135 = tpu.matmul %134, %109, %cst_41 {dimension_numbers = #tpu.dot_dimension_numbers<[1], [0], [0], [1], [0, 0, 1, 1], [], []>} : vector<8x32xf32>, vector<32x32xf32>, vector<8x32xf32> -> vector<8x32xf32>
    %136 = vector.extract_strided_slice %108 {offsets = [4, 0, 0], sizes = [1, 8, 32], strides = [1, 1, 1]} : vector<8x8x32xf32> to vector<1x8x32xf32>
    %137 = vector.shape_cast %136 : vector<1x8x32xf32> to vector<8x32xf32>
    %138 = arith.addf %135, %137 : vector<8x32xf32>
    %cst_42 = arith.constant 0.000000e+00 : f32
    %139 = vector.broadcast %cst_42 : f32 to vector<8x32xf32>
    %140 = arith.maximumf %138, %139 : vector<8x32xf32>
    %cst_43 = arith.constant dense<0.000000e+00> : vector<8x32xf32>
    %141 = tpu.matmul %140, %109, %cst_43 {dimension_numbers = #tpu.dot_dimension_numbers<[1], [0], [0], [1], [0, 0, 1, 1], [], []>} : vector<8x32xf32>, vector<32x32xf32>, vector<8x32xf32> -> vector<8x32xf32>
    %142 = vector.extract_strided_slice %108 {offsets = [5, 0, 0], sizes = [1, 8, 32], strides = [1, 1, 1]} : vector<8x8x32xf32> to vector<1x8x32xf32>
    %143 = vector.shape_cast %142 : vector<1x8x32xf32> to vector<8x32xf32>
    %144 = arith.addf %141, %143 : vector<8x32xf32>
    %cst_44 = arith.constant 0.000000e+00 : f32
    %145 = vector.broadcast %cst_44 : f32 to vector<8x32xf32>
    %146 = arith.maximumf %144, %145 : vector<8x32xf32>
    %cst_45 = arith.constant dense<0.000000e+00> : vector<8x32xf32>
    %147 = tpu.matmul %146, %109, %cst_45 {dimension_numbers = #tpu.dot_dimension_numbers<[1], [0], [0], [1], [0, 0, 1, 1], [], []>} : vector<8x32xf32>, vector<32x32xf32>, vector<8x32xf32> -> vector<8x32xf32>
    %148 = vector.extract_strided_slice %108 {offsets = [6, 0, 0], sizes = [1, 8, 32], strides = [1, 1, 1]} : vector<8x8x32xf32> to vector<1x8x32xf32>
    %149 = vector.shape_cast %148 : vector<1x8x32xf32> to vector<8x32xf32>
    %150 = arith.addf %147, %149 : vector<8x32xf32>
    %cst_46 = arith.constant 0.000000e+00 : f32
    %151 = vector.broadcast %cst_46 : f32 to vector<8x32xf32>
    %152 = arith.maximumf %150, %151 : vector<8x32xf32>
    %cst_47 = arith.constant dense<0.000000e+00> : vector<8x32xf32>
    %153 = tpu.matmul %152, %109, %cst_47 {dimension_numbers = #tpu.dot_dimension_numbers<[1], [0], [0], [1], [0, 0, 1, 1], [], []>} : vector<8x32xf32>, vector<32x32xf32>, vector<8x32xf32> -> vector<8x32xf32>
    %154 = vector.extract_strided_slice %108 {offsets = [7, 0, 0], sizes = [1, 8, 32], strides = [1, 1, 1]} : vector<8x8x32xf32> to vector<1x8x32xf32>
    %155 = vector.shape_cast %154 : vector<1x8x32xf32> to vector<8x32xf32>
    %156 = arith.addf %153, %155 : vector<8x32xf32>
    %cst_48 = arith.constant 0.000000e+00 : f32
    %157 = vector.broadcast %cst_48 : f32 to vector<8x32xf32>
    %158 = arith.maximumf %156, %157 : vector<8x32xf32>
    %c0_49 = arith.constant 0 : index
    %c0_50 = arith.constant 0 : index
    %159 = vector.load %arg7[%c0_49, %c0_50] : memref<64x32xf32, #tpu.memory_space<vmem>>, vector<64x32xf32>
    %cst_51 = arith.constant dense<0.000000e+00> : vector<8x32xf32>
    %160 = tpu.matmul %92, %159, %cst_51 {dimension_numbers = #tpu.dot_dimension_numbers<[1], [0], [0], [1], [0, 0, 1, 1], [], []>} : vector<8x64xf32>, vector<64x32xf32>, vector<8x32xf32> -> vector<8x32xf32>
    %c0_52 = arith.constant 0 : index
    %c0_53 = arith.constant 0 : index
    %161 = vector.load %arg8[%c0_52, %c0_53] : memref<1x32xf32, #tpu.memory_space<vmem>>, vector<1x32xf32>
    %162 = vector.broadcast %161 : vector<1x32xf32> to vector<8x32xf32>
    %163 = arith.addf %160, %162 : vector<8x32xf32>
    %cst_54 = arith.constant 0.000000e+00 : f32
    %164 = vector.broadcast %cst_54 : f32 to vector<8x32xf32>
    %165 = arith.maximumf %163, %164 : vector<8x32xf32>
    %c0_55 = arith.constant 0 : index
    %c0_56 = arith.constant 0 : index
    %166 = vector.load %arg10[%c0_55, %c0_56] : memref<32x256xf32, #tpu.memory_space<vmem>>, vector<32x256xf32>
    %cst_57 = arith.constant dense<0.000000e+00> : vector<8x256xf32>
    %167 = tpu.matmul %158, %166, %cst_57 {dimension_numbers = #tpu.dot_dimension_numbers<[1], [0], [0], [1], [0, 0, 1, 1], [], []>} : vector<8x32xf32>, vector<32x256xf32>, vector<8x256xf32> -> vector<8x256xf32>
    %c0_58 = arith.constant 0 : index
    %c0_59 = arith.constant 0 : index
    %168 = vector.load %arg11[%c0_58, %c0_59] : memref<32x256xf32, #tpu.memory_space<vmem>>, vector<32x256xf32>
    %cst_60 = arith.constant dense<0.000000e+00> : vector<8x256xf32>
    %169 = tpu.matmul %165, %168, %cst_60 {dimension_numbers = #tpu.dot_dimension_numbers<[1], [0], [0], [1], [0, 0, 1, 1], [], []>} : vector<8x32xf32>, vector<32x256xf32>, vector<8x256xf32> -> vector<8x256xf32>
    %170 = arith.addf %167, %169 : vector<8x256xf32>
    %c0_61 = arith.constant 0 : index
    %c0_62 = arith.constant 0 : index
    %171 = vector.load %arg12[%c0_61, %c0_62] : memref<1x256xf32, #tpu.memory_space<vmem>>, vector<1x256xf32>
    %172 = vector.broadcast %171 : vector<1x256xf32> to vector<8x256xf32>
    %173 = arith.addf %170, %172 : vector<8x256xf32>
    %174 = vector.extract_strided_slice %173 {offsets = [0, 0], sizes = [8, 128], strides = [1, 1]} : vector<8x256xf32> to vector<8x128xf32>
    %175 = vector.extract_strided_slice %173 {offsets = [0, 128], sizes = [8, 128], strides = [1, 1]} : vector<8x256xf32> to vector<8x128xf32>
    %cst_63 = arith.constant 2.000000e+01 : f32
    %176 = vector.broadcast %cst_63 : f32 to vector<8x128xf32>
    %177 = arith.cmpf ogt, %175, %176 : vector<8x128xf32>
    %cst_64 = arith.constant 2.000000e+01 : f32
    %178 = vector.broadcast %cst_64 : f32 to vector<8x128xf32>
    %179 = arith.minimumf %175, %178 : vector<8x128xf32>
    %180 = math.exp %179 : vector<8x128xf32>
    %181 = math.log1p %180 : vector<8x128xf32>
    %182 = arith.select %177, %175, %181 : vector<8x128xi1>, vector<8x128xf32>
    %cst_65 = arith.constant 9.99999974E-5 : f32
    %183 = vector.broadcast %cst_65 : f32 to vector<8x128xf32>
    %184 = arith.addf %182, %183 : vector<8x128xf32>
    %c0_66 = arith.constant 0 : index
    %c0_67 = arith.constant 0 : index
    %185 = vector.load %arg13[%c0_66, %c0_67] : memref<8x128xf32, #tpu.memory_space<vmem>>, vector<8x128xf32>
    tpu.vector_store %arg13[%c0_66, %c0_67], %174 {strides = array<i32>} : memref<8x128xf32, #tpu.memory_space<vmem>>, vector<8x128xf32>,
    %c0_68 = arith.constant 0 : index
    %c0_69 = arith.constant 0 : index
    %186 = vector.load %arg14[%c0_68, %c0_69] : memref<8x128xf32, #tpu.memory_space<vmem>>, vector<8x128xf32>
    tpu.vector_store %arg14[%c0_68, %c0_69], %184 {strides = array<i32>} : memref<8x128xf32, #tpu.memory_space<vmem>>, vector<8x128xf32>,
    return
  }
  func.func @transform_0(%arg0: i32) -> (i32, i32, i32) {
    %c0_i32 = arith.constant 0 : i32
    %c0_i32_0 = arith.constant 0 : i32
    %c0_i32_1 = arith.constant 0 : i32
    return %c0_i32, %arg0, %c0_i32_0 : i32, i32, i32
  }
  func.func @transform_1(%arg0: i32) -> (i32, i32) {
    %c0_i32 = arith.constant 0 : i32
    %c0_i32_0 = arith.constant 0 : i32
    %c0_i32_1 = arith.constant 0 : i32
    return %c0_i32, %c0_i32_0 : i32, i32
  }
  func.func @transform_2(%arg0: i32) -> (i32, i32) {
    %c0_i32 = arith.constant 0 : i32
    %c0_i32_0 = arith.constant 0 : i32
    %c0_i32_1 = arith.constant 0 : i32
    return %c0_i32, %c0_i32_0 : i32, i32
  }
  func.func @transform_3(%arg0: i32) -> (i32, i32) {
    %c0_i32 = arith.constant 0 : i32
    %c0_i32_0 = arith.constant 0 : i32
    %c0_i32_1 = arith.constant 0 : i32
    return %c0_i32, %c0_i32_0 : i32, i32
  }
  func.func @transform_4(%arg0: i32) -> (i32, i32) {
    %c0_i32 = arith.constant 0 : i32
    %c0_i32_0 = arith.constant 0 : i32
    %c0_i32_1 = arith.constant 0 : i32
    return %c0_i32, %c0_i32_0 : i32, i32
  }
  func.func @transform_5(%arg0: i32) -> (i32, i32) {
    %c0_i32 = arith.constant 0 : i32
    %c0_i32_0 = arith.constant 0 : i32
    %c0_i32_1 = arith.constant 0 : i32
    return %c0_i32, %c0_i32_0 : i32, i32
  }
  func.func @transform_6(%arg0: i32) -> (i32, i32) {
    %c0_i32 = arith.constant 0 : i32
    %c0_i32_0 = arith.constant 0 : i32
    %c0_i32_1 = arith.constant 0 : i32
    return %c0_i32, %c0_i32_0 : i32, i32
  }
  func.func @transform_7(%arg0: i32) -> (i32, i32) {
    %c0_i32 = arith.constant 0 : i32
    %c0_i32_0 = arith.constant 0 : i32
    %c0_i32_1 = arith.constant 0 : i32
    return %c0_i32, %c0_i32_0 : i32, i32
  }
  func.func @transform_8(%arg0: i32) -> (i32, i32) {
    %c0_i32 = arith.constant 0 : i32
    %c0_i32_0 = arith.constant 0 : i32
    %c0_i32_1 = arith.constant 0 : i32
    return %c0_i32, %c0_i32_0 : i32, i32
  }
  func.func @transform_9(%arg0: i32) -> (i32, i32) {
    %c0_i32 = arith.constant 0 : i32
    %c0_i32_0 = arith.constant 0 : i32
    %c0_i32_1 = arith.constant 0 : i32
    return %c0_i32, %c0_i32_0 : i32, i32
  }
  func.func @transform_10(%arg0: i32) -> (i32, i32) {
    %c0_i32 = arith.constant 0 : i32
    %c0_i32_0 = arith.constant 0 : i32
    %c0_i32_1 = arith.constant 0 : i32
    return %c0_i32, %c0_i32_0 : i32, i32
  }
  func.func @transform_11(%arg0: i32) -> (i32, i32) {
    %c0_i32 = arith.constant 0 : i32
    %c0_i32_0 = arith.constant 0 : i32
    %c0_i32_1 = arith.constant 0 : i32
    return %c0_i32, %c0_i32_0 : i32, i32
  }
  func.func @transform_12(%arg0: i32) -> (i32, i32) {
    %c0_i32 = arith.constant 0 : i32
    %c0_i32_0 = arith.constant 0 : i32
    return %arg0, %c0_i32 : i32, i32
  }
  func.func @transform_13(%arg0: i32) -> (i32, i32) {
    %c0_i32 = arith.constant 0 : i32
    %c0_i32_0 = arith.constant 0 : i32
    return %arg0, %c0_i32 : i32, i32
  }
}

</mosaic_0001>

<llo_original>
// kernel: tpu_custom_call.1
$region0: #{tpu_custom_call.1}
  #allocation0 [shape = 'u32[]', space=smem, size = 0x4, offset = 0x4, fixed_abs, tag = 'smem constant byte address 0x4 - core index']
  #allocation1 [shape = 'u32[144,128]{1,0:T(1,128)}', space=vmem, size = 0x12000, scoped, tag = 'internal scratch']
  %s0 = inlined_call_operand.vmem [shape: f32[8,8,16], index: 0, kind: input, shape index: {}]
  %s1 = inlined_call_operand.hbm [shape: f32[16,64], index: 1, kind: input, shape index: {}]
  %s2 = inlined_call_operand.vmem [shape: f32[1,64], index: 2, kind: input, shape index: {}]
  %s3 = inlined_call_operand.vmem [shape: f32[64,64], index: 3, kind: input, shape index: {}]
  %s4 = inlined_call_operand.vmem [shape: f32[64,32], index: 4, kind: input, shape index: {}]
  %s5 = inlined_call_operand.vmem [shape: f32[1,32], index: 5, kind: input, shape index: {}]
  %s6 = inlined_call_operand.vmem [shape: f32[64,32], index: 6, kind: input, shape index: {}]
  %s7 = inlined_call_operand.vmem [shape: f32[1,32], index: 7, kind: input, shape index: {}]
  %s8 = inlined_call_operand.hbm [shape: f32[32,32], index: 8, kind: input, shape index: {}]
  %s9 = inlined_call_operand.vmem [shape: f32[32,256], index: 9, kind: input, shape index: {}]
  %s10 = inlined_call_operand.hbm [shape: f32[32,256], index: 10, kind: input, shape index: {}]
  %s11 = inlined_call_operand.vmem [shape: f32[1,256], index: 11, kind: input, shape index: {}]
  %s12 = inlined_call_operand.hbm [shape: f32[8,128], index: 12, kind: output, shape index: {0}]
  %s13 = inlined_call_operand.hbm [shape: f32[8,128], index: 13, kind: output, shape index: {1}]
  %14 = xla_tuple %s12, %s13
  %s15 = sld [smem:[#allocation0]]
  $region78: #{tpu_custom_call.1} parent=0
    _
  %s17 = ssub.s32 1, %s15
  %s18 = scalar_select 0, %s17, %s15
  $region1: #{tpu_custom_call.1} parent=0
    #allocation2 [shape = 'u8[8192]{0}', space=vmem, size = 0x2000, scoped, tag = 'input window, operand 1, single buffered']
    #allocation3 [shape = 's32[1]{0}', space=sflag, size = 0x4, scoped, tag = 'scoped memory for tpu_custom_call.1']
    #allocation4 [shape = 's32[1]{0}', space=sflag, size = 0x4, scoped, tag = 'scoped memory for tpu_custom_call.1']
    #allocation5 [shape = 'u8[16384]{0}', space=vmem, size = 0x4000, scoped, tag = 'input window, operand 8, single buffered']
    #allocation6 [shape = 's32[1]{0}', space=sflag, size = 0x4, scoped, tag = 'scoped memory for tpu_custom_call.1']
    #allocation7 [shape = 'u8[32768]{0}', space=vmem, size = 0x8000, scoped, tag = 'input window, operand 10, single buffered']
    #allocation8 [shape = 'u8[4096]{0}', space=vmem, size = 0x1000, scoped, tag = 'output window, operand 0, single buffered']
    #allocation9 [shape = 'u8[4096]{0}', space=vmem, size = 0x1000, scoped, tag = 'output window, operand 1, single buffered']
    #allocation10 [shape = 's32[1]{0}', space=sflag, size = 0x4, scoped, tag = 'scoped memory for tpu_custom_call.1']
    %19 = vsyncpa [#allocation3], 0
    %20 = vsyncpa [#allocation6], 0
    %21 = vsyncpa [#allocation4], 0
    %22 = vsyncpa [#allocation10], 0
    // Predicated region
    $region2: #{tpu_custom_call.1} parent=1 // pred_check
      _
    $region3: #{tpu_custom_call.1} parent=1 // pred_check_branch
      %24 = sbr.rel (0) target = $region5
    $region4: #{tpu_custom_call.1} parent=1 // pred_region
      _
    $region5: #{tpu_custom_call.1} parent=1 // pred_fallthru
      _
    // Predicated region
    $region6: #{tpu_custom_call.1} parent=1 // pred_check
      _
    $region7: #{tpu_custom_call.1} parent=1 // pred_check_branch
      %26 = sbr.rel (0) target = $region9
    $region8: #{tpu_custom_call.1} parent=1 // pred_region
      %s28 = ssub.s32 256, 256
      %29 = vsyncadd [#allocation3], %s28
      %s30 = sshll.u32 [#allocation2], 4
      %s31 = int_to_ptr.vmem [resolvable:$true] %s30
      %36 = dma.hbm_to_vmem [thread:$0]  %s1, 256, %s31, [#allocation3], 128, 128, 8
    $region9: #{tpu_custom_call.1} parent=1 // pred_fallthru
      _
    // Predicated region
    $region10: #{tpu_custom_call.1} parent=1 // pred_check
      _
    $region11: #{tpu_custom_call.1} parent=1 // pred_check_branch
      %38 = sbr.rel (0) target = $region13
    $region12: #{tpu_custom_call.1} parent=1 // pred_region
      _
    $region13: #{tpu_custom_call.1} parent=1 // pred_fallthru
      _
    // Predicated region
    $region14: #{tpu_custom_call.1} parent=1 // pred_check
      _
    $region15: #{tpu_custom_call.1} parent=1 // pred_check_branch
      %40 = sbr.rel (0) target = $region17
    $region16: #{tpu_custom_call.1} parent=1 // pred_region
      _
    $region17: #{tpu_custom_call.1} parent=1 // pred_fallthru
      _
    // Predicated region
    $region18: #{tpu_custom_call.1} parent=1 // pred_check
      _
    $region19: #{tpu_custom_call.1} parent=1 // pred_check_branch
      %42 = sbr.rel (0) target = $region21
    $region20: #{tpu_custom_call.1} parent=1 // pred_region
      _
    $region21: #{tpu_custom_call.1} parent=1 // pred_fallthru
      _
    // Predicated region
    $region22: #{tpu_custom_call.1} parent=1 // pred_check
      _
    $region23: #{tpu_custom_call.1} parent=1 // pred_check_branch
      %44 = sbr.rel (0) target = $region25
    $region24: #{tpu_custom_call.1} parent=1 // pred_region
      _
    $region25: #{tpu_custom_call.1} parent=1 // pred_fallthru
      _
    // Predicated region
    $region26: #{tpu_custom_call.1} parent=1 // pred_check
      _
    $region27: #{tpu_custom_call.1} parent=1 // pred_check_branch
      %46 = sbr.rel (0) target = $region29
    $region28: #{tpu_custom_call.1} parent=1 // pred_region
      _
    $region29: #{tpu_custom_call.1} parent=1 // pred_fallthru
      _
    // Predicated region
    $region30: #{tpu_custom_call.1} parent=1 // pred_check
      _
    $region31: #{tpu_custom_call.1} parent=1 // pred_check_branch
      %48 = sbr.rel (0) target = $region33
    $region32: #{tpu_custom_call.1} parent=1 // pred_region
      _
    $region33: #{tpu_custom_call.1} parent=1 // pred_fallthru
      _
    // Predicated region
    $region34: #{tpu_custom_call.1} parent=1 // pred_check
      _
    $region35: #{tpu_custom_call.1} parent=1 // pred_check_branch
      %50 = sbr.rel (0) target = $region37
    $region36: #{tpu_custom_call.1} parent=1 // pred_region
      %s52 = ssub.s32 512, 512
      %53 = vsyncadd [#allocation6], %s52
      %s54 = sshll.u32 [#allocation5], 4
      %s55 = int_to_ptr.vmem [resolvable:$true] %s54
      %60 = dma.hbm_to_vmem [thread:$0]  %s8, 512, %s55, [#allocation6], 128, 128, 8
    $region37: #{tpu_custom_call.1} parent=1 // pred_fallthru
      _
    // Predicated region
    $region38: #{tpu_custom_call.1} parent=1 // pred_check
      _
    $region39: #{tpu_custom_call.1} parent=1 // pred_check_branch
      %62 = sbr.rel (0) target = $region41
    $region40: #{tpu_custom_call.1} parent=1 // pred_region
      _
    $region41: #{tpu_custom_call.1} parent=1 // pred_fallthru
      _
    // Predicated region
    $region42: #{tpu_custom_call.1} parent=1 // pred_check
      _
    $region43: #{tpu_custom_call.1} parent=1 // pred_check_branch
      %64 = sbr.rel (0) target = $region45
    $region44: #{tpu_custom_call.1} parent=1 // pred_region
      %s66 = ssub.s32 1024, 1024
      %67 = vsyncadd [#allocation6], %s66
      %s68 = sshll.u32 [#allocation7], 4
      %s69 = int_to_ptr.vmem [resolvable:$true] %s68
      %74 = dma.hbm_to_vmem [thread:$0]  %s10, 1024, %s69, [#allocation6], 256, 256, 16
    $region45: #{tpu_custom_call.1} parent=1 // pred_fallthru
      _
    // Predicated region
    $region46: #{tpu_custom_call.1} parent=1 // pred_check
      _
    $region47: #{tpu_custom_call.1} parent=1 // pred_check_branch
      %76 = sbr.rel (0) target = $region49
    $region48: #{tpu_custom_call.1} parent=1 // pred_region
      _
    $region49: #{tpu_custom_call.1} parent=1 // pred_fallthru
      _
    // Predicated region
    $region50: #{tpu_custom_call.1} parent=1 // pred_check
      _
    $region51: #{tpu_custom_call.1} parent=1 // pred_check_branch
      %78 = sbr.rel (0) target = $region53
    $region52: #{tpu_custom_call.1} parent=1 // pred_region
      %79 = dma.done [#allocation3], 256
    $region53: #{tpu_custom_call.1} parent=1 // pred_fallthru
      _
    // Predicated region
    $region54: #{tpu_custom_call.1} parent=1 // pred_check
      _
    $region55: #{tpu_custom_call.1} parent=1 // pred_check_branch
      %81 = sbr.rel (0) target = $region57
    $region56: #{tpu_custom_call.1} parent=1 // pred_region
      %82 = dma.done [#allocation6], 512
    $region57: #{tpu_custom_call.1} parent=1 // pred_fallthru
      _
    // Predicated region
    $region58: #{tpu_custom_call.1} parent=1 // pred_check
      _
    $region59: #{tpu_custom_call.1} parent=1 // pred_check_branch
      %84 = sbr.rel (0) target = $region61
    $region60: #{tpu_custom_call.1} parent=1 // pred_region
      %85 = dma.done [#allocation6], 1024
    $region61: #{tpu_custom_call.1} parent=1 // pred_fallthru
      _
    %v86 = vld [vmem:[%s0] sm:$0xff]
    %v87 = vld [vmem:[%s0 + $0x8] sm:$0xff]
    %v88 = vld [vmem:[%s0 + $0x10] sm:$0xff]
    %v89 = vld [vmem:[%s0 + $0x18] sm:$0xff]
    %v90 = vld [vmem:[%s0 + $0x20] sm:$0xff]
    %v91 = vld [vmem:[%s0 + $0x28] sm:$0xff]
    %v92 = vld [vmem:[%s0 + $0x30] sm:$0xff]
    %v93 = vld [vmem:[%s0 + $0x38] sm:$0xff]
    %v94 = vld [vmem:[#allocation2] sm:$0xff]
    %v95 = vld [vmem:[#allocation2 + $0x8] sm:$0xff]
    %v96 = vld [vmem:[%s2] sm:$0x1]
    %v98 = vlaneseq
    %v99 = vshrl.u32 %v98, 7
    %v100 = vsub.s32 0, %v99
    %v101 = vrot.slane %v96, %v100
    %vm103 = vcmask 130048
    %v105 = vsel %vm103, %v86, 0
    %v108 = vsel %vm103, %v87, 0
    %v111 = vsel %vm103, %v88, 0
    %v114 = vsel %vm103, %v89, 0
    %v117 = vsel %vm103, %v90, 0
    %v120 = vsel %vm103, %v91, 0
    %v123 = vsel %vm103, %v92, 0
    %v126 = vsel %vm103, %v93, 0
    %128 = vmatprep.subr.mxu0 0.0
    %129 = vmatpush1.msra.mxu0 %v94
    %130 = vmatprep.subr.mxu0 0.0
    %131 = vmatpush1.msra.mxu0 %v95
    %132 = vmatprep.subr.mxu0 0.0
    %133 = vmatpush1.msra.mxu0 0.0
    %134 = vmatprep.subr.mxu0 0.0
    %135 = vmatpush1.msra.mxu0 0.0
    %136 = vmatprep.subr.mxu0 0.0
    %137 = vmatpush1.msra.mxu0 0.0
    %138 = vmatprep.subr.mxu0 0.0
    %139 = vmatpush1.msra.mxu0 0.0
    %140 = vmatprep.subr.mxu0 0.0
    %141 = vmatpush1.msra.mxu0 0.0
    %142 = vmatprep.subr.mxu0 0.0
    %143 = vmatpush1.msra.mxu0 0.0
    %144 = vmatprep.subr.mxu0 0.0
    %145 = vmatpush1.msra.mxu0 0.0
    %146 = vmatprep.subr.mxu0 0.0
    %147 = vmatpush1.msra.mxu0 0.0
    %148 = vmatprep.subr.mxu0 0.0
    %149 = vmatpush1.msra.mxu0 0.0
    %150 = vmatprep.subr.mxu0 0.0
    %151 = vmatpush1.msra.mxu0 0.0
    %152 = vmatprep.subr.mxu0 0.0
    %153 = vmatpush1.msra.mxu0 0.0
    %154 = vmatprep.subr.mxu0 0.0
    %155 = vmatpush1.msra.mxu0 0.0
    %156 = vmatprep.subr.mxu0 0.0
    %157 = vmatpush1.msra.mxu0 0.0
    %158 = vmatprep.subr.mxu0 0.0
    %159 = vmatpush1.msra.mxu0 0.0
    %160 = vmatprep.subr.mxu0 0.0
    %161 = vmatpush1.msra.mxu0 0.0
    %162 = vmatprep.subr.mxu0 0.0
    %163 = vmatpush1.msra.mxu0 0.0
    %164 = vmatprep.subr.mxu0 0.0
    %165 = vmatpush1.msra.mxu0 0.0
    %166 = vmatprep.subr.mxu0 0.0
    %167 = vmatpush1.msra.mxu0 0.0
    %168 = vmatprep.subr.mxu0 0.0
    %169 = vmatpush1.msra.mxu0 0.0
    %170 = vmatprep.subr.mxu0 0.0
    %171 = vmatpush1.msra.mxu0 0.0
    %172 = vmatprep.subr.mxu0 0.0
    %173 = vmatpush1.msra.mxu0 0.0
    %174 = vmatprep.subr.mxu0 0.0
    %175 = vmatpush1.msra.mxu0 0.0
    %176 = vmatprep.subr.mxu0 0.0
    %177 = vmatpush1.msra.mxu0 0.0
    %178 = vmatprep.subr.mxu0 0.0
    %179 = vmatpush1.msra.mxu0 0.0
    %180 = vmatprep.subr.mxu0 0.0
    %181 = vmatpush1.msra.mxu0 0.0
    %182 = vmatprep.subr.mxu0 0.0
    %183 = vmatpush1.msra.mxu0 0.0
    %184 = vmatprep.subr.mxu0 0.0
    %185 = vmatpush1.msra.mxu0 0.0
    %186 = vmatprep.subr.mxu0 0.0
    %187 = vmatpush1.msra.mxu0 0.0
    %188 = vmatprep.subr.mxu0 0.0
    %189 = vmatpush1.msra.mxu0 0.0
    %190 = vmatprep.subr.mxu0 0.0
    %191 = vmatpush1.msra.mxu0 0.0
    %192 = vmatprep.mubr.f32.mxu0 0.0
    %193 = vmatmul.mubr.f32.gmra.mrb[0].mxu0 %v105
    %v194 = vpop.f32.mrb[0].mxu0
    %v195 = vadd.f32 %v101, %v194
    %v196 = vpop.f32.mrb[0].mxu0
    %197 = vmatprep.mubr.f32.mxu0 0.0
    %198 = vmatmul.mubr.f32.gmra.mrb[0].mxu0 %v108
    %v199 = vpop.f32.mrb[0].mxu0
    %v200 = vadd.f32 %v101, %v199
    %v201 = vpop.f32.mrb[0].mxu0
    %202 = vmatprep.mubr.f32.mxu0 0.0
    %203 = vmatmul.mubr.f32.gmra.mrb[0].mxu0 %v111
    %v204 = vpop.f32.mrb[0].mxu0
    %v205 = vadd.f32 %v101, %v204
    %v206 = vpop.f32.mrb[0].mxu0
    %207 = vmatprep.mubr.f32.mxu0 0.0
    %208 = vmatmul.mubr.f32.gmra.mrb[0].mxu0 %v114
    %v209 = vpop.f32.mrb[0].mxu0
    %v210 = vadd.f32 %v101, %v209
    %v211 = vpop.f32.mrb[0].mxu0
    %212 = vmatprep.mubr.f32.mxu0 0.0
    %213 = vmatmul.mubr.f32.gmra.mrb[0].mxu0 %v117
    %v214 = vpop.f32.mrb[0].mxu0
    %v215 = vadd.f32 %v101, %v214
    %v216 = vpop.f32.mrb[0].mxu0
    %217 = vmatprep.mubr.f32.mxu0 0.0
    %218 = vmatmul.mubr.f32.gmra.mrb[0].mxu0 %v120
    %v219 = vpop.f32.mrb[0].mxu0
    %v220 = vadd.f32 %v101, %v219
    %v221 = vpop.f32.mrb[0].mxu0
    %222 = vmatprep.mubr.f32.mxu0 0.0
    %223 = vmatmul.mubr.f32.gmra.mrb[0].mxu0 %v123
    %v224 = vpop.f32.mrb[0].mxu0
    %v225 = vadd.f32 %v101, %v224
    %v226 = vpop.f32.mrb[0].mxu0
    %227 = vmatprep.mubr.f32.mxu0 0.0
    %228 = vmatmul.mubr.f32.gmra.mrb[0].mxu0 %v126
    %v229 = vpop.f32.mrb[0].mxu0
    %v230 = vadd.f32 %v101, %v229
    %v231 = vpop.f32.mrb[0].mxu0
    %232 = vdwg.mxu0
    %v233 = vlaneseq
    %v234 = vand.u32 %v233, 127
    %vm235 = vcmp.lt.s32.totalorder %v234, 32
    %v236 = vld [vmem:[%s3] sm:$0xff]
    %v237 = vld [vmem:[%s3 + $0x8] sm:$0xff]
    %v238 = vld [vmem:[%s3 + $0x10] sm:$0xff]
    %v239 = vld [vmem:[%s3 + $0x18] sm:$0xff]
    %v240 = vld [vmem:[%s3 + $0x20] sm:$0xff]
    %v241 = vld [vmem:[%s3 + $0x28] sm:$0xff]
    %v242 = vld [vmem:[%s3 + $0x30] sm:$0xff]
    %v243 = vld [vmem:[%s3 + $0x38] sm:$0xff]
    %v244 = vsel %vm235, %v195, %v230
    %vm245 = vcmask 523264
    %v247 = vsel %vm245, 0.0, 0
    %249 = vmatprep.subr.mxu0 0.0
    %250 = vmatpush1.msra.mxu0 %v236
    %251 = vmatprep.subr.mxu0 0.0
    %252 = vmatpush1.msra.mxu0 %v237
    %253 = vmatprep.subr.mxu0 0.0
    %254 = vmatpush1.msra.mxu0 %v238
    %255 = vmatprep.subr.mxu0 0.0
    %256 = vmatpush1.msra.mxu0 %v239
    %257 = vmatprep.subr.mxu0 0.0
    %258 = vmatpush1.msra.mxu0 %v240
    %259 = vmatprep.subr.mxu0 0.0
    %260 = vmatpush1.msra.mxu0 %v241
    %261 = vmatprep.subr.mxu0 0.0
    %262 = vmatpush1.msra.mxu0 %v242
    %263 = vmatprep.subr.mxu0 0.0
    %264 = vmatpush1.msra.mxu0 %v243
    %265 = vmatprep.subr.mxu0 0.0
    %266 = vmatpush1.msra.mxu0 0.0
    %267 = vmatprep.subr.mxu0 0.0
    %268 = vmatpush1.msra.mxu0 0.0
    %269 = vmatprep.subr.mxu0 0.0
    %270 = vmatpush1.msra.mxu0 0.0
    %271 = vmatprep.subr.mxu0 0.0
    %272 = vmatpush1.msra.mxu0 0.0
    %273 = vmatprep.subr.mxu0 0.0
    %274 = vmatpush1.msra.mxu0 0.0
    %275 = vmatprep.subr.mxu0 0.0
    %276 = vmatpush1.msra.mxu0 0.0
    %277 = vmatprep.subr.mxu0 0.0
    %278 = vmatpush1.msra.mxu0 0.0
    %279 = vmatprep.subr.mxu0 0.0
    %280 = vmatpush1.msra.mxu0 0.0
    %281 = vmatprep.subr.mxu0 0.0
    %282 = vmatpush1.msra.mxu0 0.0
    %283 = vmatprep.subr.mxu0 0.0
    %284 = vmatpush1.msra.mxu0 0.0
    %285 = vmatprep.subr.mxu0 0.0
    %286 = vmatpush1.msra.mxu0 0.0
    %287 = vmatprep.subr.mxu0 0.0
    %288 = vmatpush1.msra.mxu0 0.0
    %289 = vmatprep.subr.mxu0 0.0
    %290 = vmatpush1.msra.mxu0 0.0
    %291 = vmatprep.subr.mxu0 0.0
    %292 = vmatpush1.msra.mxu0 0.0
    %293 = vmatprep.subr.mxu0 0.0
    %294 = vmatpush1.msra.mxu0 0.0
    %295 = vmatprep.subr.mxu0 0.0
    %296 = vmatpush1.msra.mxu0 0.0
    %297 = vmatprep.subr.mxu0 0.0
    %298 = vmatpush1.msra.mxu0 0.0
    %299 = vmatprep.subr.mxu0 0.0
    %300 = vmatpush1.msra.mxu0 0.0
    %301 = vmatprep.subr.mxu0 0.0
    %302 = vmatpush1.msra.mxu0 0.0
    %303 = vmatprep.subr.mxu0 0.0
    %304 = vmatpush1.msra.mxu0 0.0
    %305 = vmatprep.subr.mxu0 0.0
    %306 = vmatpush1.msra.mxu0 0.0
    %307 = vmatprep.subr.mxu0 0.0
    %308 = vmatpush1.msra.mxu0 0.0
    %309 = vmatprep.subr.mxu0 0.0
    %310 = vmatpush1.msra.mxu0 0.0
    %311 = vmatprep.subr.mxu0 0.0
    %312 = vmatpush1.msra.mxu0 0.0
    %313 = vmatprep.mubr.f32.mxu0 0.0
    %314 = vmatmul.mubr.f32.gmra.mrb[0].mxu0 %v247
    %v315 = vpop.f32.mrb[0].mxu0
    %v316 = vadd.f32 %v244, %v315
    %v317 = vpop.f32.mrb[0].mxu0
    %318 = vdwg.mxu0
    %v319 = vmax.f32 %v316, 0.0
    %v320 = vsel %vm235, %v200, %v225
    %v322 = vsel %vm245, %v319, 0
    %324 = vmatprep.subr.mxu0 0.0
    %325 = vmatpush1.msra.mxu0 %v236
    %326 = vmatprep.subr.mxu0 0.0
    %327 = vmatpush1.msra.mxu0 %v237
    %328 = vmatprep.subr.mxu0 0.0
    %329 = vmatpush1.msra.mxu0 %v238
    %330 = vmatprep.subr.mxu0 0.0
    %331 = vmatpush1.msra.mxu0 %v239
    %332 = vmatprep.subr.mxu0 0.0
    %333 = vmatpush1.msra.mxu0 %v240
    %334 = vmatprep.subr.mxu0 0.0
    %335 = vmatpush1.msra.mxu0 %v241
    %336 = vmatprep.subr.mxu0 0.0
    %337 = vmatpush1.msra.mxu0 %v242
    %338 = vmatprep.subr.mxu0 0.0
    %339 = vmatpush1.msra.mxu0 %v243
    %340 = vmatprep.subr.mxu0 0.0
    %341 = vmatpush1.msra.mxu0 0.0
    %342 = vmatprep.subr.mxu0 0.0
    %343 = vmatpush1.msra.mxu0 0.0
    %344 = vmatprep.subr.mxu0 0.0
    %345 = vmatpush1.msra.mxu0 0.0
    %346 = vmatprep.subr.mxu0 0.0
    %347 = vmatpush1.msra.mxu0 0.0
    %348 = vmatprep.subr.mxu0 0.0
    %349 = vmatpush1.msra.mxu0 0.0
    %350 = vmatprep.subr.mxu0 0.0
    %351 = vmatpush1.msra.mxu0 0.0
    %352 = vmatprep.subr.mxu0 0.0
    %353 = vmatpush1.msra.mxu0 0.0
    %354 = vmatprep.subr.mxu0 0.0
    %355 = vmatpush1.msra.mxu0 0.0
    %356 = vmatprep.subr.mxu0 0.0
    %357 = vmatpush1.msra.mxu0 0.0
    %358 = vmatprep.subr.mxu0 0.0
    %359 = vmatpush1.msra.mxu0 0.0
    %360 = vmatprep.subr.mxu0 0.0
    %361 = vmatpush1.msra.mxu0 0.0
    %362 = vmatprep.subr.mxu0 0.0
    %363 = vmatpush1.msra.mxu0 0.0
    %364 = vmatprep.subr.mxu0 0.0
    %365 = vmatpush1.msra.mxu0 0.0
    %366 = vmatprep.subr.mxu0 0.0
    %367 = vmatpush1.msra.mxu0 0.0
    %368 = vmatprep.subr.mxu0 0.0
    %369 = vmatpush1.msra.mxu0 0.0
    %370 = vmatprep.subr.mxu0 0.0
    %371 = vmatpush1.msra.mxu0 0.0
    %372 = vmatprep.subr.mxu0 0.0
    %373 = vmatpush1.msra.mxu0 0.0
    %374 = vmatprep.subr.mxu0 0.0
    %375 = vmatpush1.msra.mxu0 0.0
    %376 = vmatprep.subr.mxu0 0.0
    %377 = vmatpush1.msra.mxu0 0.0
    %378 = vmatprep.subr.mxu0 0.0
    %379 = vmatpush1.msra.mxu0 0.0
    %380 = vmatprep.subr.mxu0 0.0
    %381 = vmatpush1.msra.mxu0 0.0
    %382 = vmatprep.subr.mxu0 0.0
    %383 = vmatpush1.msra.mxu0 0.0
    %384 = vmatprep.subr.mxu0 0.0
    %385 = vmatpush1.msra.mxu0 0.0
    %386 = vmatprep.subr.mxu0 0.0
    %387 = vmatpush1.msra.mxu0 0.0
    %388 = vmatprep.mubr.f32.mxu0 0.0
    %389 = vmatmul.mubr.f32.gmra.mrb[0].mxu0 %v322
    %v390 = vpop.f32.mrb[0].mxu0
    %v391 = vadd.f32 %v320, %v390
    %v392 = vpop.f32.mrb[0].mxu0
    %393 = vdwg.mxu0
    %v394 = vmax.f32 %v391, 0.0
    %v395 = vsel %vm235, %v205, %v220
    %v397 = vsel %vm245, %v394, 0
    %399 = vmatprep.subr.mxu0 0.0
    %400 = vmatpush1.msra.mxu0 %v236
    %401 = vmatprep.subr.mxu0 0.0
    %402 = vmatpush1.msra.mxu0 %v237
    %403 = vmatprep.subr.mxu0 0.0
    %404 = vmatpush1.msra.mxu0 %v238
    %405 = vmatprep.subr.mxu0 0.0
    %406 = vmatpush1.msra.mxu0 %v239
    %407 = vmatprep.subr.mxu0 0.0
    %408 = vmatpush1.msra.mxu0 %v240
    %409 = vmatprep.subr.mxu0 0.0
    %410 = vmatpush1.msra.mxu0 %v241
    %411 = vmatprep.subr.mxu0 0.0
    %412 = vmatpush1.msra.mxu0 %v242
    %413 = vmatprep.subr.mxu0 0.0
    %414 = vmatpush1.msra.mxu0 %v243
    %415 = vmatprep.subr.mxu0 0.0
    %416 = vmatpush1.msra.mxu0 0.0
    %417 = vmatprep.subr.mxu0 0.0
    %418 = vmatpush1.msra.mxu0 0.0
    %419 = vmatprep.subr.mxu0 0.0
    %420 = vmatpush1.msra.mxu0 0.0
    %421 = vmatprep.subr.mxu0 0.0
    %422 = vmatpush1.msra.mxu0 0.0
    %423 = vmatprep.subr.mxu0 0.0
    %424 = vmatpush1.msra.mxu0 0.0
    %425 = vmatprep.subr.mxu0 0.0
    %426 = vmatpush1.msra.mxu0 0.0
    %427 = vmatprep.subr.mxu0 0.0
    %428 = vmatpush1.msra.mxu0 0.0
    %429 = vmatprep.subr.mxu0 0.0
    %430 = vmatpush1.msra.mxu0 0.0
    %431 = vmatprep.subr.mxu0 0.0
    %432 = vmatpush1.msra.mxu0 0.0
    %433 = vmatprep.subr.mxu0 0.0
    %434 = vmatpush1.msra.mxu0 0.0
    %435 = vmatprep.subr.mxu0 0.0
    %436 = vmatpush1.msra.mxu0 0.0
    %437 = vmatprep.subr.mxu0 0.0
    %438 = vmatpush1.msra.mxu0 0.0
    %439 = vmatprep.subr.mxu0 0.0
    %440 = vmatpush1.msra.mxu0 0.0
    %441 = vmatprep.subr.mxu0 0.0
    %442 = vmatpush1.msra.mxu0 0.0
    %443 = vmatprep.subr.mxu0 0.0
    %444 = vmatpush1.msra.mxu0 0.0
    %445 = vmatprep.subr.mxu0 0.0
    %446 = vmatpush1.msra.mxu0 0.0
    %447 = vmatprep.subr.mxu0 0.0
    %448 = vmatpush1.msra.mxu0 0.0
    %449 = vmatprep.subr.mxu0 0.0
    %450 = vmatpush1.msra.mxu0 0.0
    %451 = vmatprep.subr.mxu0 0.0
    %452 = vmatpush1.msra.mxu0 0.0
    %453 = vmatprep.subr.mxu0 0.0
    %454 = vmatpush1.msra.mxu0 0.0
    %455 = vmatprep.subr.mxu0 0.0
    %456 = vmatpush1.msra.mxu0 0.0
    %457 = vmatprep.subr.mxu0 0.0
    %458 = vmatpush1.msra.mxu0 0.0
    %459 = vmatprep.subr.mxu0 0.0
    %460 = vmatpush1.msra.mxu0 0.0
    %461 = vmatprep.subr.mxu0 0.0
    %462 = vmatpush1.msra.mxu0 0.0
    %463 = vmatprep.mubr.f32.mxu0 0.0
    %464 = vmatmul.mubr.f32.gmra.mrb[0].mxu0 %v397
    %v465 = vpop.f32.mrb[0].mxu0
    %v466 = vadd.f32 %v395, %v465
    %v467 = vpop.f32.mrb[0].mxu0
    %468 = vdwg.mxu0
    %v469 = vmax.f32 %v466, 0.0
    %v470 = vsel %vm235, %v210, %v215
    %v472 = vsel %vm245, %v469, 0
    %474 = vmatprep.subr.mxu0 0.0
    %475 = vmatpush1.msra.mxu0 %v236
    %476 = vmatprep.subr.mxu0 0.0
    %477 = vmatpush1.msra.mxu0 %v237
    %478 = vmatprep.subr.mxu0 0.0
    %479 = vmatpush1.msra.mxu0 %v238
    %480 = vmatprep.subr.mxu0 0.0
    %481 = vmatpush1.msra.mxu0 %v239
    %482 = vmatprep.subr.mxu0 0.0
    %483 = vmatpush1.msra.mxu0 %v240
    %484 = vmatprep.subr.mxu0 0.0
    %485 = vmatpush1.msra.mxu0 %v241
    %486 = vmatprep.subr.mxu0 0.0
    %487 = vmatpush1.msra.mxu0 %v242
    %488 = vmatprep.subr.mxu0 0.0
    %489 = vmatpush1.msra.mxu0 %v243
    %490 = vmatprep.subr.mxu0 0.0
    %491 = vmatpush1.msra.mxu0 0.0
    %492 = vmatprep.subr.mxu0 0.0
    %493 = vmatpush1.msra.mxu0 0.0
    %494 = vmatprep.subr.mxu0 0.0
    %495 = vmatpush1.msra.mxu0 0.0
    %496 = vmatprep.subr.mxu0 0.0
    %497 = vmatpush1.msra.mxu0 0.0
    %498 = vmatprep.subr.mxu0 0.0
    %499 = vmatpush1.msra.mxu0 0.0
    %500 = vmatprep.subr.mxu0 0.0
    %501 = vmatpush1.msra.mxu0 0.0
    %502 = vmatprep.subr.mxu0 0.0
    %503 = vmatpush1.msra.mxu0 0.0
    %504 = vmatprep.subr.mxu0 0.0
    %505 = vmatpush1.msra.mxu0 0.0
    %506 = vmatprep.subr.mxu0 0.0
    %507 = vmatpush1.msra.mxu0 0.0
    %508 = vmatprep.subr.mxu0 0.0
    %509 = vmatpush1.msra.mxu0 0.0
    %510 = vmatprep.subr.mxu0 0.0
    %511 = vmatpush1.msra.mxu0 0.0
    %512 = vmatprep.subr.mxu0 0.0
    %513 = vmatpush1.msra.mxu0 0.0
    %514 = vmatprep.subr.mxu0 0.0
    %515 = vmatpush1.msra.mxu0 0.0
    %516 = vmatprep.subr.mxu0 0.0
    %517 = vmatpush1.msra.mxu0 0.0
    %518 = vmatprep.subr.mxu0 0.0
    %519 = vmatpush1.msra.mxu0 0.0
    %520 = vmatprep.subr.mxu0 0.0
    %521 = vmatpush1.msra.mxu0 0.0
    %522 = vmatprep.subr.mxu0 0.0
    %523 = vmatpush1.msra.mxu0 0.0
    %524 = vmatprep.subr.mxu0 0.0
    %525 = vmatpush1.msra.mxu0 0.0
    %526 = vmatprep.subr.mxu0 0.0
    %527 = vmatpush1.msra.mxu0 0.0
    %528 = vmatprep.subr.mxu0 0.0
    %529 = vmatpush1.msra.mxu0 0.0
    %530 = vmatprep.subr.mxu0 0.0
    %531 = vmatpush1.msra.mxu0 0.0
    %532 = vmatprep.subr.mxu0 0.0
    %533 = vmatpush1.msra.mxu0 0.0
    %534 = vmatprep.subr.mxu0 0.0
    %535 = vmatpush1.msra.mxu0 0.0
    %536 = vmatprep.subr.mxu0 0.0
    %537 = vmatpush1.msra.mxu0 0.0
    %538 = vmatprep.mubr.f32.mxu0 0.0
    %539 = vmatmul.mubr.f32.gmra.mrb[0].mxu0 %v472
    %v540 = vpop.f32.mrb[0].mxu0
    %v541 = vadd.f32 %v470, %v540
    %v542 = vpop.f32.mrb[0].mxu0
    %543 = vdwg.mxu0
    %v544 = vmax.f32 %v541, 0.0
    %v545 = vsel %vm235, %v215, %v210
    %v547 = vsel %vm245, %v544, 0
    %549 = vmatprep.subr.mxu0 0.0
    %550 = vmatpush1.msra.mxu0 %v236
    %551 = vmatprep.subr.mxu0 0.0
    %552 = vmatpush1.msra.mxu0 %v237
    %553 = vmatprep.subr.mxu0 0.0
    %554 = vmatpush1.msra.mxu0 %v238
    %555 = vmatprep.subr.mxu0 0.0
    %556 = vmatpush1.msra.mxu0 %v239
    %557 = vmatprep.subr.mxu0 0.0
    %558 = vmatpush1.msra.mxu0 %v240
    %559 = vmatprep.subr.mxu0 0.0
    %560 = vmatpush1.msra.mxu0 %v241
    %561 = vmatprep.subr.mxu0 0.0
    %562 = vmatpush1.msra.mxu0 %v242
    %563 = vmatprep.subr.mxu0 0.0
    %564 = vmatpush1.msra.mxu0 %v243
    %565 = vmatprep.subr.mxu0 0.0
    %566 = vmatpush1.msra.mxu0 0.0
    %567 = vmatprep.subr.mxu0 0.0
    %568 = vmatpush1.msra.mxu0 0.0
    %569 = vmatprep.subr.mxu0 0.0
    %570 = vmatpush1.msra.mxu0 0.0
    %571 = vmatprep.subr.mxu0 0.0
    %572 = vmatpush1.msra.mxu0 0.0
    %573 = vmatprep.subr.mxu0 0.0
    %574 = vmatpush1.msra.mxu0 0.0
    %575 = vmatprep.subr.mxu0 0.0
    %576 = vmatpush1.msra.mxu0 0.0
    %577 = vmatprep.subr.mxu0 0.0
    %578 = vmatpush1.msra.mxu0 0.0
    %579 = vmatprep.subr.mxu0 0.0
    %580 = vmatpush1.msra.mxu0 0.0
    %581 = vmatprep.subr.mxu0 0.0
    %582 = vmatpush1.msra.mxu0 0.0
    %583 = vmatprep.subr.mxu0 0.0
    %584 = vmatpush1.msra.mxu0 0.0
    %585 = vmatprep.subr.mxu0 0.0
    %586 = vmatpush1.msra.mxu0 0.0
    %587 = vmatprep.subr.mxu0 0.0
    %588 = vmatpush1.msra.mxu0 0.0
    %589 = vmatprep.subr.mxu0 0.0
    %590 = vmatpush1.msra.mxu0 0.0
    %591 = vmatprep.subr.mxu0 0.0
    %592 = vmatpush1.msra.mxu0 0.0
    %593 = vmatprep.subr.mxu0 0.0
    %594 = vmatpush1.msra.mxu0 0.0
    %595 = vmatprep.subr.mxu0 0.0
    %596 = vmatpush1.msra.mxu0 0.0
    %597 = vmatprep.subr.mxu0 0.0
    %598 = vmatpush1.msra.mxu0 0.0
    %599 = vmatprep.subr.mxu0 0.0
    %600 = vmatpush1.msra.mxu0 0.0
    %601 = vmatprep.subr.mxu0 0.0
    %602 = vmatpush1.msra.mxu0 0.0
    %603 = vmatprep.subr.mxu0 0.0
    %604 = vmatpush1.msra.mxu0 0.0
    %605 = vmatprep.subr.mxu0 0.0
    %606 = vmatpush1.msra.mxu0 0.0
    %607 = vmatprep.subr.mxu0 0.0
    %608 = vmatpush1.msra.mxu0 0.0
    %609 = vmatprep.subr.mxu0 0.0
    %610 = vmatpush1.msra.mxu0 0.0
    %611 = vmatprep.subr.mxu0 0.0
    %612 = vmatpush1.msra.mxu0 0.0
    %613 = vmatprep.mubr.f32.mxu0 0.0
    %614 = vmatmul.mubr.f32.gmra.mrb[0].mxu0 %v547
    %v615 = vpop.f32.mrb[0].mxu0
    %v616 = vadd.f32 %v545, %v615
    %v617 = vpop.f32.mrb[0].mxu0
    %618 = vdwg.mxu0
    %v619 = vmax.f32 %v616, 0.0
    %v620 = vsel %vm235, %v220, %v205
    %v622 = vsel %vm245, %v619, 0
    %624 = vmatprep.subr.mxu0 0.0
    %625 = vmatpush1.msra.mxu0 %v236
    %626 = vmatprep.subr.mxu0 0.0
    %627 = vmatpush1.msra.mxu0 %v237
    %628 = vmatprep.subr.mxu0 0.0
    %629 = vmatpush1.msra.mxu0 %v238
    %630 = vmatprep.subr.mxu0 0.0
    %631 = vmatpush1.msra.mxu0 %v239
    %632 = vmatprep.subr.mxu0 0.0
    %633 = vmatpush1.msra.mxu0 %v240
    %634 = vmatprep.subr.mxu0 0.0
    %635 = vmatpush1.msra.mxu0 %v241
    %636 = vmatprep.subr.mxu0 0.0
    %637 = vmatpush1.msra.mxu0 %v242
    %638 = vmatprep.subr.mxu0 0.0
    %639 = vmatpush1.msra.mxu0 %v243
    %640 = vmatprep.subr.mxu0 0.0
    %641 = vmatpush1.msra.mxu0 0.0
    %642 = vmatprep.subr.mxu0 0.0
    %643 = vmatpush1.msra.mxu0 0.0
    %644 = vmatprep.subr.mxu0 0.0
    %645 = vmatpush1.msra.mxu0 0.0
    %646 = vmatprep.subr.mxu0 0.0
    %647 = vmatpush1.msra.mxu0 0.0
    %648 = vmatprep.subr.mxu0 0.0
    %649 = vmatpush1.msra.mxu0 0.0
    %650 = vmatprep.subr.mxu0 0.0
    %651 = vmatpush1.msra.mxu0 0.0
    %652 = vmatprep.subr.mxu0 0.0
    %653 = vmatpush1.msra.mxu0 0.0
    %654 = vmatprep.subr.mxu0 0.0
    %655 = vmatpush1.msra.mxu0 0.0
    %656 = vmatprep.subr.mxu0 0.0
    %657 = vmatpush1.msra.mxu0 0.0
    %658 = vmatprep.subr.mxu0 0.0
    %659 = vmatpush1.msra.mxu0 0.0
    %660 = vmatprep.subr.mxu0 0.0
    %661 = vmatpush1.msra.mxu0 0.0
    %662 = vmatprep.subr.mxu0 0.0
    %663 = vmatpush1.msra.mxu0 0.0
    %664 = vmatprep.subr.mxu0 0.0
    %665 = vmatpush1.msra.mxu0 0.0
    %666 = vmatprep.subr.mxu0 0.0
    %667 = vmatpush1.msra.mxu0 0.0
    %668 = vmatprep.subr.mxu0 0.0
    %669 = vmatpush1.msra.mxu0 0.0
    %670 = vmatprep.subr.mxu0 0.0
    %671 = vmatpush1.msra.mxu0 0.0
    %672 = vmatprep.subr.mxu0 0.0
    %673 = vmatpush1.msra.mxu0 0.0
    %674 = vmatprep.subr.mxu0 0.0
    %675 = vmatpush1.msra.mxu0 0.0
    %676 = vmatprep.subr.mxu0 0.0
    %677 = vmatpush1.msra.mxu0 0.0
    %678 = vmatprep.subr.mxu0 0.0
    %679 = vmatpush1.msra.mxu0 0.0
    %680 = vmatprep.subr.mxu0 0.0
    %681 = vmatpush1.msra.mxu0 0.0
    %682 = vmatprep.subr.mxu0 0.0
    %683 = vmatpush1.msra.mxu0 0.0
    %684 = vmatprep.subr.mxu0 0.0
    %685 = vmatpush1.msra.mxu0 0.0
    %686 = vmatprep.subr.mxu0 0.0
    %687 = vmatpush1.msra.mxu0 0.0
    %688 = vmatprep.mubr.f32.mxu0 0.0
    %689 = vmatmul.mubr.f32.gmra.mrb[0].mxu0 %v622
    %v690 = vpop.f32.mrb[0].mxu0
    %v691 = vadd.f32 %v620, %v690
    %v692 = vpop.f32.mrb[0].mxu0
    %693 = vdwg.mxu0
    %v694 = vmax.f32 %v691, 0.0
    %v695 = vsel %vm235, %v225, %v200
    %v697 = vsel %vm245, %v694, 0
    %699 = vmatprep.subr.mxu0 0.0
    %700 = vmatpush1.msra.mxu0 %v236
    %701 = vmatprep.subr.mxu0 0.0
    %702 = vmatpush1.msra.mxu0 %v237
    %703 = vmatprep.subr.mxu0 0.0
    %704 = vmatpush1.msra.mxu0 %v238
    %705 = vmatprep.subr.mxu0 0.0
    %706 = vmatpush1.msra.mxu0 %v239
    %707 = vmatprep.subr.mxu0 0.0
    %708 = vmatpush1.msra.mxu0 %v240
    %709 = vmatprep.subr.mxu0 0.0
    %710 = vmatpush1.msra.mxu0 %v241
    %711 = vmatprep.subr.mxu0 0.0
    %712 = vmatpush1.msra.mxu0 %v242
    %713 = vmatprep.subr.mxu0 0.0
    %714 = vmatpush1.msra.mxu0 %v243
    %715 = vmatprep.subr.mxu0 0.0
    %716 = vmatpush1.msra.mxu0 0.0
    %717 = vmatprep.subr.mxu0 0.0
    %718 = vmatpush1.msra.mxu0 0.0
    %719 = vmatprep.subr.mxu0 0.0
    %720 = vmatpush1.msra.mxu0 0.0
    %721 = vmatprep.subr.mxu0 0.0
    %722 = vmatpush1.msra.mxu0 0.0
    %723 = vmatprep.subr.mxu0 0.0
    %724 = vmatpush1.msra.mxu0 0.0
    %725 = vmatprep.subr.mxu0 0.0
    %726 = vmatpush1.msra.mxu0 0.0
    %727 = vmatprep.subr.mxu0 0.0
    %728 = vmatpush1.msra.mxu0 0.0
    %729 = vmatprep.subr.mxu0 0.0
    %730 = vmatpush1.msra.mxu0 0.0
    %731 = vmatprep.subr.mxu0 0.0
    %732 = vmatpush1.msra.mxu0 0.0
    %733 = vmatprep.subr.mxu0 0.0
    %734 = vmatpush1.msra.mxu0 0.0
    %735 = vmatprep.subr.mxu0 0.0
    %736 = vmatpush1.msra.mxu0 0.0
    %737 = vmatprep.subr.mxu0 0.0
    %738 = vmatpush1.msra.mxu0 0.0
    %739 = vmatprep.subr.mxu0 0.0
    %740 = vmatpush1.msra.mxu0 0.0
    %741 = vmatprep.subr.mxu0 0.0
    %742 = vmatpush1.msra.mxu0 0.0
    %743 = vmatprep.subr.mxu0 0.0
    %744 = vmatpush1.msra.mxu0 0.0
    %745 = vmatprep.subr.mxu0 0.0
    %746 = vmatpush1.msra.mxu0 0.0
    %747 = vmatprep.subr.mxu0 0.0
    %748 = vmatpush1.msra.mxu0 0.0
    %749 = vmatprep.subr.mxu0 0.0
    %750 = vmatpush1.msra.mxu0 0.0
    %751 = vmatprep.subr.mxu0 0.0
    %752 = vmatpush1.msra.mxu0 0.0
    %753 = vmatprep.subr.mxu0 0.0
    %754 = vmatpush1.msra.mxu0 0.0
    %755 = vmatprep.subr.mxu0 0.0
    %756 = vmatpush1.msra.mxu0 0.0
    %757 = vmatprep.subr.mxu0 0.0
    %758 = vmatpush1.msra.mxu0 0.0
    %759 = vmatprep.subr.mxu0 0.0
    %760 = vmatpush1.msra.mxu0 0.0
    %761 = vmatprep.subr.mxu0 0.0
    %762 = vmatpush1.msra.mxu0 0.0
    %763 = vmatprep.mubr.f32.mxu0 0.0
    %764 = vmatmul.mubr.f32.gmra.mrb[0].mxu0 %v697
    %v765 = vpop.f32.mrb[0].mxu0
    %v766 = vadd.f32 %v695, %v765
    %v767 = vpop.f32.mrb[0].mxu0
    %768 = vdwg.mxu0
    %v769 = vmax.f32 %v766, 0.0
    %v770 = vsel %vm235, %v230, %v195
    %v772 = vsel %vm245, %v769, 0
    %774 = vmatprep.subr.mxu0 0.0
    %775 = vmatpush1.msra.mxu0 %v236
    %776 = vmatprep.subr.mxu0 0.0
    %777 = vmatpush1.msra.mxu0 %v237
    %778 = vmatprep.subr.mxu0 0.0
    %779 = vmatpush1.msra.mxu0 %v238
    %780 = vmatprep.subr.mxu0 0.0
    %781 = vmatpush1.msra.mxu0 %v239
    %782 = vmatprep.subr.mxu0 0.0
    %783 = vmatpush1.msra.mxu0 %v240
    %784 = vmatprep.subr.mxu0 0.0
    %785 = vmatpush1.msra.mxu0 %v241
    %786 = vmatprep.subr.mxu0 0.0
    %787 = vmatpush1.msra.mxu0 %v242
    %788 = vmatprep.subr.mxu0 0.0
    %789 = vmatpush1.msra.mxu0 %v243
    %790 = vmatprep.subr.mxu0 0.0
    %791 = vmatpush1.msra.mxu0 0.0
    %792 = vmatprep.subr.mxu0 0.0
    %793 = vmatpush1.msra.mxu0 0.0
    %794 = vmatprep.subr.mxu0 0.0
    %795 = vmatpush1.msra.mxu0 0.0
    %796 = vmatprep.subr.mxu0 0.0
    %797 = vmatpush1.msra.mxu0 0.0
    %798 = vmatprep.subr.mxu0 0.0
    %799 = vmatpush1.msra.mxu0 0.0
    %800 = vmatprep.subr.mxu0 0.0
    %801 = vmatpush1.msra.mxu0 0.0
    %802 = vmatprep.subr.mxu0 0.0
    %803 = vmatpush1.msra.mxu0 0.0
    %804 = vmatprep.subr.mxu0 0.0
    %805 = vmatpush1.msra.mxu0 0.0
    %806 = vmatprep.subr.mxu0 0.0
    %807 = vmatpush1.msra.mxu0 0.0
    %808 = vmatprep.subr.mxu0 0.0
    %809 = vmatpush1.msra.mxu0 0.0
    %810 = vmatprep.subr.mxu0 0.0
    %811 = vmatpush1.msra.mxu0 0.0
    %812 = vmatprep.subr.mxu0 0.0
    %813 = vmatpush1.msra.mxu0 0.0
    %814 = vmatprep.subr.mxu0 0.0
    %815 = vmatpush1.msra.mxu0 0.0
    %816 = vmatprep.subr.mxu0 0.0
    %817 = vmatpush1.msra.mxu0 0.0
    %818 = vmatprep.subr.mxu0 0.0
    %819 = vmatpush1.msra.mxu0 0.0
    %820 = vmatprep.subr.mxu0 0.0
    %821 = vmatpush1.msra.mxu0 0.0
    %822 = vmatprep.subr.mxu0 0.0
    %823 = vmatpush1.msra.mxu0 0.0
    %824 = vmatprep.subr.mxu0 0.0
    %825 = vmatpush1.msra.mxu0 0.0
    %826 = vmatprep.subr.mxu0 0.0
    %827 = vmatpush1.msra.mxu0 0.0
    %828 = vmatprep.subr.mxu0 0.0
    %829 = vmatpush1.msra.mxu0 0.0
    %830 = vmatprep.subr.mxu0 0.0
    %831 = vmatpush1.msra.mxu0 0.0
    %832 = vmatprep.subr.mxu0 0.0
    %833 = vmatpush1.msra.mxu0 0.0
    %834 = vmatprep.subr.mxu0 0.0
    %835 = vmatpush1.msra.mxu0 0.0
    %836 = vmatprep.subr.mxu0 0.0
    %837 = vmatpush1.msra.mxu0 0.0
    %838 = vmatprep.mubr.f32.mxu0 0.0
    %839 = vmatmul.mubr.f32.gmra.mrb[0].mxu0 %v772
    %v840 = vpop.f32.mrb[0].mxu0
    %v841 = vadd.f32 %v770, %v840
    %v842 = vpop.f32.mrb[0].mxu0
    %843 = vdwg.mxu0
    %v844 = vmax.f32 %v841, 0.0
    %v845 = vsel %vm235, %v319, %v844
    %v846 = vsel %vm235, %v394, %v769
    %v847 = vsel %vm235, %v469, %v694
    %v848 = vsel %vm235, %v544, %v619
    %v849 = vsel %vm235, %v619, %v544
    %v850 = vsel %vm235, %v694, %v469
    %v851 = vsel %vm235, %v769, %v394
    %v852 = vsel %vm235, %v844, %v319
    %v853 = vld [vmem:[%s4] sm:$0xff]
    %v854 = vld [vmem:[%s4 + $0x8] sm:$0xff]
    %v855 = vld [vmem:[%s4 + $0x10] sm:$0xff]
    %v856 = vld [vmem:[%s4 + $0x18] sm:$0xff]
    %v857 = vld [vmem:[%s4 + $0x20] sm:$0xff]
    %v858 = vld [vmem:[%s4 + $0x28] sm:$0xff]
    %v859 = vld [vmem:[%s4 + $0x30] sm:$0xff]
    %v860 = vld [vmem:[%s4 + $0x38] sm:$0xff]
    %v861 = vld [vmem:[%s5] sm:$0x1]
    %v863 = vlaneseq
    %v864 = vshrl.u32 %v863, 7
    %v865 = vsub.s32 0, %v864
    %v866 = vrot.slane %v861, %v865
    %v869 = vsel %vm245, %v845, 0
    %v872 = vsel %vm245, %v846, 0
    %v875 = vsel %vm245, %v847, 0
    %v878 = vsel %vm245, %v848, 0
    %v881 = vsel %vm245, %v849, 0
    %v884 = vsel %vm245, %v850, 0
    %v887 = vsel %vm245, %v851, 0
    %v890 = vsel %vm245, %v852, 0
    %892 = vmatprep.subr.mxu0 0.0
    %893 = vmatpush1.msra.mxu0 %v853
    %894 = vmatprep.subr.mxu0 0.0
    %895 = vmatpush1.msra.mxu0 %v854
    %896 = vmatprep.subr.mxu0 0.0
    %897 = vmatpush1.msra.mxu0 %v855
    %898 = vmatprep.subr.mxu0 0.0
    %899 = vmatpush1.msra.mxu0 %v856
    %900 = vmatprep.subr.mxu0 0.0
    %901 = vmatpush1.msra.mxu0 %v857
    %902 = vmatprep.subr.mxu0 0.0
    %903 = vmatpush1.msra.mxu0 %v858
    %904 = vmatprep.subr.mxu0 0.0
    %905 = vmatpush1.msra.mxu0 %v859
    %906 = vmatprep.subr.mxu0 0.0
    %907 = vmatpush1.msra.mxu0 %v860
    %908 = vmatprep.subr.mxu0 0.0
    %909 = vmatpush1.msra.mxu0 0.0
    %910 = vmatprep.subr.mxu0 0.0
    %911 = vmatpush1.msra.mxu0 0.0
    %912 = vmatprep.subr.mxu0 0.0
    %913 = vmatpush1.msra.mxu0 0.0
    %914 = vmatprep.subr.mxu0 0.0
    %915 = vmatpush1.msra.mxu0 0.0
    %916 = vmatprep.subr.mxu0 0.0
    %917 = vmatpush1.msra.mxu0 0.0
    %918 = vmatprep.subr.mxu0 0.0
    %919 = vmatpush1.msra.mxu0 0.0
    %920 = vmatprep.subr.mxu0 0.0
    %921 = vmatpush1.msra.mxu0 0.0
    %922 = vmatprep.subr.mxu0 0.0
    %923 = vmatpush1.msra.mxu0 0.0
    %924 = vmatprep.subr.mxu0 0.0
    %925 = vmatpush1.msra.mxu0 0.0
    %926 = vmatprep.subr.mxu0 0.0
    %927 = vmatpush1.msra.mxu0 0.0
    %928 = vmatprep.subr.mxu0 0.0
    %929 = vmatpush1.msra.mxu0 0.0
    %930 = vmatprep.subr.mxu0 0.0
    %931 = vmatpush1.msra.mxu0 0.0
    %932 = vmatprep.subr.mxu0 0.0
    %933 = vmatpush1.msra.mxu0 0.0
    %934 = vmatprep.subr.mxu0 0.0
    %935 = vmatpush1.msra.mxu0 0.0
    %936 = vmatprep.subr.mxu0 0.0
    %937 = vmatpush1.msra.mxu0 0.0
    %938 = vmatprep.subr.mxu0 0.0
    %939 = vmatpush1.msra.mxu0 0.0
    %940 = vmatprep.subr.mxu0 0.0
    %941 = vmatpush1.msra.mxu0 0.0
    %942 = vmatprep.subr.mxu0 0.0
    %943 = vmatpush1.msra.mxu0 0.0
    %944 = vmatprep.subr.mxu0 0.0
    %945 = vmatpush1.msra.mxu0 0.0
    %946 = vmatprep.subr.mxu0 0.0
    %947 = vmatpush1.msra.mxu0 0.0
    %948 = vmatprep.subr.mxu0 0.0
    %949 = vmatpush1.msra.mxu0 0.0
    %950 = vmatprep.subr.mxu0 0.0
    %951 = vmatpush1.msra.mxu0 0.0
    %952 = vmatprep.subr.mxu0 0.0
    %953 = vmatpush1.msra.mxu0 0.0
    %954 = vmatprep.subr.mxu0 0.0
    %955 = vmatpush1.msra.mxu0 0.0
    %956 = vmatprep.mubr.f32.mxu0 0.0
    %957 = vmatmul.mubr.f32.gmra.mrb[0].mxu0 %v869
    %v958 = vpop.f32.mrb[0].mxu0
    %v959 = vadd.f32 %v866, %v958
    %v960 = vpop.f32.mrb[0].mxu0
    %961 = vmatprep.mubr.f32.mxu0 0.0
    %962 = vmatmul.mubr.f32.gmra.mrb[0].mxu0 %v872
    %v963 = vpop.f32.mrb[0].mxu0
    %v964 = vadd.f32 %v866, %v963
    %v965 = vpop.f32.mrb[0].mxu0
    %966 = vmatprep.mubr.f32.mxu0 0.0
    %967 = vmatmul.mubr.f32.gmra.mrb[0].mxu0 %v875
    %v968 = vpop.f32.mrb[0].mxu0
    %v969 = vadd.f32 %v866, %v968
    %v970 = vpop.f32.mrb[0].mxu0
    %971 = vmatprep.mubr.f32.mxu0 0.0
    %972 = vmatmul.mubr.f32.gmra.mrb[0].mxu0 %v878
    %v973 = vpop.f32.mrb[0].mxu0
    %v974 = vadd.f32 %v866, %v973
    %v975 = vpop.f32.mrb[0].mxu0
    %976 = vmatprep.mubr.f32.mxu0 0.0
    %977 = vmatmul.mubr.f32.gmra.mrb[0].mxu0 %v881
    %v978 = vpop.f32.mrb[0].mxu0
    %v979 = vadd.f32 %v866, %v978
    %v980 = vpop.f32.mrb[0].mxu0
    %981 = vmatprep.mubr.f32.mxu0 0.0
    %982 = vmatmul.mubr.f32.gmra.mrb[0].mxu0 %v884
    %v983 = vpop.f32.mrb[0].mxu0
    %v984 = vadd.f32 %v866, %v983
    %v985 = vpop.f32.mrb[0].mxu0
    %986 = vmatprep.mubr.f32.mxu0 0.0
    %987 = vmatmul.mubr.f32.gmra.mrb[0].mxu0 %v887
    %v988 = vpop.f32.mrb[0].mxu0
    %v989 = vadd.f32 %v866, %v988
    %v990 = vpop.f32.mrb[0].mxu0
    %991 = vmatprep.mubr.f32.mxu0 0.0
    %992 = vmatmul.mubr.f32.gmra.mrb[0].mxu0 %v890
    %v993 = vpop.f32.mrb[0].mxu0
    %v994 = vadd.f32 %v866, %v993
    %v995 = vpop.f32.mrb[0].mxu0
    %996 = vdwg.mxu0
    %v997 = vld [vmem:[#allocation5] sm:$0xff]
    %v998 = vld [vmem:[#allocation5 + $0x8] sm:$0xff]
    %v999 = vld [vmem:[#allocation5 + $0x10] sm:$0xff]
    %v1000 = vld [vmem:[#allocation5 + $0x18] sm:$0xff]
    %vm1001 = vcmask 261120
    %v1002 = vsel %vm1001, 0.0, 0
    %1004 = vmatprep.subr.mxu0 0.0
    %1005 = vmatpush1.msra.mxu0 %v997
    %1006 = vmatprep.subr.mxu0 0.0
    %1007 = vmatpush1.msra.mxu0 %v998
    %1008 = vmatprep.subr.mxu0 0.0
    %1009 = vmatpush1.msra.mxu0 %v999
    %1010 = vmatprep.subr.mxu0 0.0
    %1011 = vmatpush1.msra.mxu0 %v1000
    %1012 = vmatprep.subr.mxu0 0.0
    %1013 = vmatpush1.msra.mxu0 0.0
    %1014 = vmatprep.subr.mxu0 0.0
    %1015 = vmatpush1.msra.mxu0 0.0
    %1016 = vmatprep.subr.mxu0 0.0
    %1017 = vmatpush1.msra.mxu0 0.0
    %1018 = vmatprep.subr.mxu0 0.0
    %1019 = vmatpush1.msra.mxu0 0.0
    %1020 = vmatprep.subr.mxu0 0.0
    %1021 = vmatpush1.msra.mxu0 0.0
    %1022 = vmatprep.subr.mxu0 0.0
    %1023 = vmatpush1.msra.mxu0 0.0
    %1024 = vmatprep.subr.mxu0 0.0
    %1025 = vmatpush1.msra.mxu0 0.0
    %1026 = vmatprep.subr.mxu0 0.0
    %1027 = vmatpush1.msra.mxu0 0.0
    %1028 = vmatprep.subr.mxu0 0.0
    %1029 = vmatpush1.msra.mxu0 0.0
    %1030 = vmatprep.subr.mxu0 0.0
    %1031 = vmatpush1.msra.mxu0 0.0
    %1032 = vmatprep.subr.mxu0 0.0
    %1033 = vmatpush1.msra.mxu0 0.0
    %1034 = vmatprep.subr.mxu0 0.0
    %1035 = vmatpush1.msra.mxu0 0.0
    %1036 = vmatprep.subr.mxu0 0.0
    %1037 = vmatpush1.msra.mxu0 0.0
    %1038 = vmatprep.subr.mxu0 0.0
    %1039 = vmatpush1.msra.mxu0 0.0
    %1040 = vmatprep.subr.mxu0 0.0
    %1041 = vmatpush1.msra.mxu0 0.0
    %1042 = vmatprep.subr.mxu0 0.0
    %1043 = vmatpush1.msra.mxu0 0.0
    %1044 = vmatprep.subr.mxu0 0.0
    %1045 = vmatpush1.msra.mxu0 0.0
    %1046 = vmatprep.subr.mxu0 0.0
    %1047 = vmatpush1.msra.mxu0 0.0
    %1048 = vmatprep.subr.mxu0 0.0
    %1049 = vmatpush1.msra.mxu0 0.0
    %1050 = vmatprep.subr.mxu0 0.0
    %1051 = vmatpush1.msra.mxu0 0.0
    %1052 = vmatprep.subr.mxu0 0.0
    %1053 = vmatpush1.msra.mxu0 0.0
    %1054 = vmatprep.subr.mxu0 0.0
    %1055 = vmatpush1.msra.mxu0 0.0
    %1056 = vmatprep.subr.mxu0 0.0
    %1057 = vmatpush1.msra.mxu0 0.0
    %1058 = vmatprep.subr.mxu0 0.0
    %1059 = vmatpush1.msra.mxu0 0.0
    %1060 = vmatprep.subr.mxu0 0.0
    %1061 = vmatpush1.msra.mxu0 0.0
    %1062 = vmatprep.subr.mxu0 0.0
    %1063 = vmatpush1.msra.mxu0 0.0
    %1064 = vmatprep.subr.mxu0 0.0
    %1065 = vmatpush1.msra.mxu0 0.0
    %1066 = vmatprep.subr.mxu0 0.0
    %1067 = vmatpush1.msra.mxu0 0.0
    %1068 = vmatprep.mubr.f32.mxu0 0.0
    %1069 = vmatmul.mubr.f32.gmra.mrb[0].mxu0 %v1002
    %v1070 = vpop.f32.mrb[0].mxu0
    %v1071 = vadd.f32 %v959, %v1070
    %v1072 = vpop.f32.mrb[0].mxu0
    %1073 = vdwg.mxu0
    %v1074 = vmax.f32 %v1071, 0.0
    %v1076 = vsel %vm1001, %v1074, 0
    %1078 = vmatprep.subr.mxu0 0.0
    %1079 = vmatpush1.msra.mxu0 %v997
    %1080 = vmatprep.subr.mxu0 0.0
    %1081 = vmatpush1.msra.mxu0 %v998
    %1082 = vmatprep.subr.mxu0 0.0
    %1083 = vmatpush1.msra.mxu0 %v999
    %1084 = vmatprep.subr.mxu0 0.0
    %1085 = vmatpush1.msra.mxu0 %v1000
    %1086 = vmatprep.subr.mxu0 0.0
    %1087 = vmatpush1.msra.mxu0 0.0
    %1088 = vmatprep.subr.mxu0 0.0
    %1089 = vmatpush1.msra.mxu0 0.0
    %1090 = vmatprep.subr.mxu0 0.0
    %1091 = vmatpush1.msra.mxu0 0.0
    %1092 = vmatprep.subr.mxu0 0.0
    %1093 = vmatpush1.msra.mxu0 0.0
    %1094 = vmatprep.subr.mxu0 0.0
    %1095 = vmatpush1.msra.mxu0 0.0
    %1096 = vmatprep.subr.mxu0 0.0
    %1097 = vmatpush1.msra.mxu0 0.0
    %1098 = vmatprep.subr.mxu0 0.0
    %1099 = vmatpush1.msra.mxu0 0.0
    %1100 = vmatprep.subr.mxu0 0.0
    %1101 = vmatpush1.msra.mxu0 0.0
    %1102 = vmatprep.subr.mxu0 0.0
    %1103 = vmatpush1.msra.mxu0 0.0
    %1104 = vmatprep.subr.mxu0 0.0
    %1105 = vmatpush1.msra.mxu0 0.0
    %1106 = vmatprep.subr.mxu0 0.0
    %1107 = vmatpush1.msra.mxu0 0.0
    %1108 = vmatprep.subr.mxu0 0.0
    %1109 = vmatpush1.msra.mxu0 0.0
    %1110 = vmatprep.subr.mxu0 0.0
    %1111 = vmatpush1.msra.mxu0 0.0
    %1112 = vmatprep.subr.mxu0 0.0
    %1113 = vmatpush1.msra.mxu0 0.0
    %1114 = vmatprep.subr.mxu0 0.0
    %1115 = vmatpush1.msra.mxu0 0.0
    %1116 = vmatprep.subr.mxu0 0.0
    %1117 = vmatpush1.msra.mxu0 0.0
    %1118 = vmatprep.subr.mxu0 0.0
    %1119 = vmatpush1.msra.mxu0 0.0
    %1120 = vmatprep.subr.mxu0 0.0
    %1121 = vmatpush1.msra.mxu0 0.0
    %1122 = vmatprep.subr.mxu0 0.0
    %1123 = vmatpush1.msra.mxu0 0.0
    %1124 = vmatprep.subr.mxu0 0.0
    %1125 = vmatpush1.msra.mxu0 0.0
    %1126 = vmatprep.subr.mxu0 0.0
    %1127 = vmatpush1.msra.mxu0 0.0
    %1128 = vmatprep.subr.mxu0 0.0
    %1129 = vmatpush1.msra.mxu0 0.0
    %1130 = vmatprep.subr.mxu0 0.0
    %1131 = vmatpush1.msra.mxu0 0.0
    %1132 = vmatprep.subr.mxu0 0.0
    %1133 = vmatpush1.msra.mxu0 0.0
    %1134 = vmatprep.subr.mxu0 0.0
    %1135 = vmatpush1.msra.mxu0 0.0
    %1136 = vmatprep.subr.mxu0 0.0
    %1137 = vmatpush1.msra.mxu0 0.0
    %1138 = vmatprep.subr.mxu0 0.0
    %1139 = vmatpush1.msra.mxu0 0.0
    %1140 = vmatprep.subr.mxu0 0.0
    %1141 = vmatpush1.msra.mxu0 0.0
    %1142 = vmatprep.mubr.f32.mxu0 0.0
    %1143 = vmatmul.mubr.f32.gmra.mrb[0].mxu0 %v1076
    %v1144 = vpop.f32.mrb[0].mxu0
    %v1145 = vadd.f32 %v964, %v1144
    %v1146 = vpop.f32.mrb[0].mxu0
    %1147 = vdwg.mxu0
    %v1148 = vmax.f32 %v1145, 0.0
    %v1150 = vsel %vm1001, %v1148, 0
    %1152 = vmatprep.subr.mxu0 0.0
    %1153 = vmatpush1.msra.mxu0 %v997
    %1154 = vmatprep.subr.mxu0 0.0
    %1155 = vmatpush1.msra.mxu0 %v998
    %1156 = vmatprep.subr.mxu0 0.0
    %1157 = vmatpush1.msra.mxu0 %v999
    %1158 = vmatprep.subr.mxu0 0.0
    %1159 = vmatpush1.msra.mxu0 %v1000
    %1160 = vmatprep.subr.mxu0 0.0
    %1161 = vmatpush1.msra.mxu0 0.0
    %1162 = vmatprep.subr.mxu0 0.0
    %1163 = vmatpush1.msra.mxu0 0.0
    %1164 = vmatprep.subr.mxu0 0.0
    %1165 = vmatpush1.msra.mxu0 0.0
    %1166 = vmatprep.subr.mxu0 0.0
    %1167 = vmatpush1.msra.mxu0 0.0
    %1168 = vmatprep.subr.mxu0 0.0
    %1169 = vmatpush1.msra.mxu0 0.0
    %1170 = vmatprep.subr.mxu0 0.0
    %1171 = vmatpush1.msra.mxu0 0.0
    %1172 = vmatprep.subr.mxu0 0.0
    %1173 = vmatpush1.msra.mxu0 0.0
    %1174 = vmatprep.subr.mxu0 0.0
    %1175 = vmatpush1.msra.mxu0 0.0
    %1176 = vmatprep.subr.mxu0 0.0
    %1177 = vmatpush1.msra.mxu0 0.0
    %1178 = vmatprep.subr.mxu0 0.0
    %1179 = vmatpush1.msra.mxu0 0.0
    %1180 = vmatprep.subr.mxu0 0.0
    %1181 = vmatpush1.msra.mxu0 0.0
    %1182 = vmatprep.subr.mxu0 0.0
    %1183 = vmatpush1.msra.mxu0 0.0
    %1184 = vmatprep.subr.mxu0 0.0
    %1185 = vmatpush1.msra.mxu0 0.0
    %1186 = vmatprep.subr.mxu0 0.0
    %1187 = vmatpush1.msra.mxu0 0.0
    %1188 = vmatprep.subr.mxu0 0.0
    %1189 = vmatpush1.msra.mxu0 0.0
    %1190 = vmatprep.subr.mxu0 0.0
    %1191 = vmatpush1.msra.mxu0 0.0
    %1192 = vmatprep.subr.mxu0 0.0
    %1193 = vmatpush1.msra.mxu0 0.0
    %1194 = vmatprep.subr.mxu0 0.0
    %1195 = vmatpush1.msra.mxu0 0.0
    %1196 = vmatprep.subr.mxu0 0.0
    %1197 = vmatpush1.msra.mxu0 0.0
    %1198 = vmatprep.subr.mxu0 0.0
    %1199 = vmatpush1.msra.mxu0 0.0
    %1200 = vmatprep.subr.mxu0 0.0
    %1201 = vmatpush1.msra.mxu0 0.0
    %1202 = vmatprep.subr.mxu0 0.0
    %1203 = vmatpush1.msra.mxu0 0.0
    %1204 = vmatprep.subr.mxu0 0.0
    %1205 = vmatpush1.msra.mxu0 0.0
    %1206 = vmatprep.subr.mxu0 0.0
    %1207 = vmatpush1.msra.mxu0 0.0
    %1208 = vmatprep.subr.mxu0 0.0
    %1209 = vmatpush1.msra.mxu0 0.0
    %1210 = vmatprep.subr.mxu0 0.0
    %1211 = vmatpush1.msra.mxu0 0.0
    %1212 = vmatprep.subr.mxu0 0.0
    %1213 = vmatpush1.msra.mxu0 0.0
    %1214 = vmatprep.subr.mxu0 0.0
    %1215 = vmatpush1.msra.mxu0 0.0
    %1216 = vmatprep.mubr.f32.mxu0 0.0
    %1217 = vmatmul.mubr.f32.gmra.mrb[0].mxu0 %v1150
    %v1218 = vpop.f32.mrb[0].mxu0
    %v1219 = vadd.f32 %v969, %v1218
    %v1220 = vpop.f32.mrb[0].mxu0
    %1221 = vdwg.mxu0
    %v1222 = vmax.f32 %v1219, 0.0
    %v1224 = vsel %vm1001, %v1222, 0
    %1226 = vmatprep.subr.mxu0 0.0
    %1227 = vmatpush1.msra.mxu0 %v997
    %1228 = vmatprep.subr.mxu0 0.0
    %1229 = vmatpush1.msra.mxu0 %v998
    %1230 = vmatprep.subr.mxu0 0.0
    %1231 = vmatpush1.msra.mxu0 %v999
    %1232 = vmatprep.subr.mxu0 0.0
    %1233 = vmatpush1.msra.mxu0 %v1000
    %1234 = vmatprep.subr.mxu0 0.0
    %1235 = vmatpush1.msra.mxu0 0.0
    %1236 = vmatprep.subr.mxu0 0.0
    %1237 = vmatpush1.msra.mxu0 0.0
    %1238 = vmatprep.subr.mxu0 0.0
    %1239 = vmatpush1.msra.mxu0 0.0
    %1240 = vmatprep.subr.mxu0 0.0
    %1241 = vmatpush1.msra.mxu0 0.0
    %1242 = vmatprep.subr.mxu0 0.0
    %1243 = vmatpush1.msra.mxu0 0.0
    %1244 = vmatprep.subr.mxu0 0.0
    %1245 = vmatpush1.msra.mxu0 0.0
    %1246 = vmatprep.subr.mxu0 0.0
    %1247 = vmatpush1.msra.mxu0 0.0
    %1248 = vmatprep.subr.mxu0 0.0
    %1249 = vmatpush1.msra.mxu0 0.0
    %1250 = vmatprep.subr.mxu0 0.0
    %1251 = vmatpush1.msra.mxu0 0.0
    %1252 = vmatprep.subr.mxu0 0.0
    %1253 = vmatpush1.msra.mxu0 0.0
    %1254 = vmatprep.subr.mxu0 0.0
    %1255 = vmatpush1.msra.mxu0 0.0
    %1256 = vmatprep.subr.mxu0 0.0
    %1257 = vmatpush1.msra.mxu0 0.0
    %1258 = vmatprep.subr.mxu0 0.0
    %1259 = vmatpush1.msra.mxu0 0.0
    %1260 = vmatprep.subr.mxu0 0.0
    %1261 = vmatpush1.msra.mxu0 0.0
    %1262 = vmatprep.subr.mxu0 0.0
    %1263 = vmatpush1.msra.mxu0 0.0
    %1264 = vmatprep.subr.mxu0 0.0
    %1265 = vmatpush1.msra.mxu0 0.0
    %1266 = vmatprep.subr.mxu0 0.0
    %1267 = vmatpush1.msra.mxu0 0.0
    %1268 = vmatprep.subr.mxu0 0.0
    %1269 = vmatpush1.msra.mxu0 0.0
    %1270 = vmatprep.subr.mxu0 0.0
    %1271 = vmatpush1.msra.mxu0 0.0
    %1272 = vmatprep.subr.mxu0 0.0
    %1273 = vmatpush1.msra.mxu0 0.0
    %1274 = vmatprep.subr.mxu0 0.0
    %1275 = vmatpush1.msra.mxu0 0.0
    %1276 = vmatprep.subr.mxu0 0.0
    %1277 = vmatpush1.msra.mxu0 0.0
    %1278 = vmatprep.subr.mxu0 0.0
    %1279 = vmatpush1.msra.mxu0 0.0
    %1280 = vmatprep.subr.mxu0 0.0
    %1281 = vmatpush1.msra.mxu0 0.0
    %1282 = vmatprep.subr.mxu0 0.0
    %1283 = vmatpush1.msra.mxu0 0.0
    %1284 = vmatprep.subr.mxu0 0.0
    %1285 = vmatpush1.msra.mxu0 0.0
    %1286 = vmatprep.subr.mxu0 0.0
    %1287 = vmatpush1.msra.mxu0 0.0
    %1288 = vmatprep.subr.mxu0 0.0
    %1289 = vmatpush1.msra.mxu0 0.0
    %1290 = vmatprep.mubr.f32.mxu0 0.0
    %1291 = vmatmul.mubr.f32.gmra.mrb[0].mxu0 %v1224
    %v1292 = vpop.f32.mrb[0].mxu0
    %v1293 = vadd.f32 %v974, %v1292
    %v1294 = vpop.f32.mrb[0].mxu0
    %1295 = vdwg.mxu0
    %v1296 = vmax.f32 %v1293, 0.0
    %v1298 = vsel %vm1001, %v1296, 0
    %1300 = vmatprep.subr.mxu0 0.0
    %1301 = vmatpush1.msra.mxu0 %v997
    %1302 = vmatprep.subr.mxu0 0.0
    %1303 = vmatpush1.msra.mxu0 %v998
    %1304 = vmatprep.subr.mxu0 0.0
    %1305 = vmatpush1.msra.mxu0 %v999
    %1306 = vmatprep.subr.mxu0 0.0
    %1307 = vmatpush1.msra.mxu0 %v1000
    %1308 = vmatprep.subr.mxu0 0.0
    %1309 = vmatpush1.msra.mxu0 0.0
    %1310 = vmatprep.subr.mxu0 0.0
    %1311 = vmatpush1.msra.mxu0 0.0
    %1312 = vmatprep.subr.mxu0 0.0
    %1313 = vmatpush1.msra.mxu0 0.0
    %1314 = vmatprep.subr.mxu0 0.0
    %1315 = vmatpush1.msra.mxu0 0.0
    %1316 = vmatprep.subr.mxu0 0.0
    %1317 = vmatpush1.msra.mxu0 0.0
    %1318 = vmatprep.subr.mxu0 0.0
    %1319 = vmatpush1.msra.mxu0 0.0
    %1320 = vmatprep.subr.mxu0 0.0
    %1321 = vmatpush1.msra.mxu0 0.0
    %1322 = vmatprep.subr.mxu0 0.0
    %1323 = vmatpush1.msra.mxu0 0.0
    %1324 = vmatprep.subr.mxu0 0.0
    %1325 = vmatpush1.msra.mxu0 0.0
    %1326 = vmatprep.subr.mxu0 0.0
    %1327 = vmatpush1.msra.mxu0 0.0
    %1328 = vmatprep.subr.mxu0 0.0
    %1329 = vmatpush1.msra.mxu0 0.0
    %1330 = vmatprep.subr.mxu0 0.0
    %1331 = vmatpush1.msra.mxu0 0.0
    %1332 = vmatprep.subr.mxu0 0.0
    %1333 = vmatpush1.msra.mxu0 0.0
    %1334 = vmatprep.subr.mxu0 0.0
    %1335 = vmatpush1.msra.mxu0 0.0
    %1336 = vmatprep.subr.mxu0 0.0
    %1337 = vmatpush1.msra.mxu0 0.0
    %1338 = vmatprep.subr.mxu0 0.0
    %1339 = vmatpush1.msra.mxu0 0.0
    %1340 = vmatprep.subr.mxu0 0.0
    %1341 = vmatpush1.msra.mxu0 0.0
    %1342 = vmatprep.subr.mxu0 0.0
    %1343 = vmatpush1.msra.mxu0 0.0
    %1344 = vmatprep.subr.mxu0 0.0
    %1345 = vmatpush1.msra.mxu0 0.0
    %1346 = vmatprep.subr.mxu0 0.0
    %1347 = vmatpush1.msra.mxu0 0.0
    %1348 = vmatprep.subr.mxu0 0.0
    %1349 = vmatpush1.msra.mxu0 0.0
    %1350 = vmatprep.subr.mxu0 0.0
    %1351 = vmatpush1.msra.mxu0 0.0
    %1352 = vmatprep.subr.mxu0 0.0
    %1353 = vmatpush1.msra.mxu0 0.0
    %1354 = vmatprep.subr.mxu0 0.0
    %1355 = vmatpush1.msra.mxu0 0.0
    %1356 = vmatprep.subr.mxu0 0.0
    %1357 = vmatpush1.msra.mxu0 0.0
    %1358 = vmatprep.subr.mxu0 0.0
    %1359 = vmatpush1.msra.mxu0 0.0
    %1360 = vmatprep.subr.mxu0 0.0
    %1361 = vmatpush1.msra.mxu0 0.0
    %1362 = vmatprep.subr.mxu0 0.0
    %1363 = vmatpush1.msra.mxu0 0.0
    %1364 = vmatprep.mubr.f32.mxu0 0.0
    %1365 = vmatmul.mubr.f32.gmra.mrb[0].mxu0 %v1298
    %v1366 = vpop.f32.mrb[0].mxu0
    %v1367 = vadd.f32 %v979, %v1366
    %v1368 = vpop.f32.mrb[0].mxu0
    %1369 = vdwg.mxu0
    %v1370 = vmax.f32 %v1367, 0.0
    %v1372 = vsel %vm1001, %v1370, 0
    %1374 = vmatprep.subr.mxu0 0.0
    %1375 = vmatpush1.msra.mxu0 %v997
    %1376 = vmatprep.subr.mxu0 0.0
    %1377 = vmatpush1.msra.mxu0 %v998
    %1378 = vmatprep.subr.mxu0 0.0
    %1379 = vmatpush1.msra.mxu0 %v999
    %1380 = vmatprep.subr.mxu0 0.0
    %1381 = vmatpush1.msra.mxu0 %v1000
    %1382 = vmatprep.subr.mxu0 0.0
    %1383 = vmatpush1.msra.mxu0 0.0
    %1384 = vmatprep.subr.mxu0 0.0
    %1385 = vmatpush1.msra.mxu0 0.0
    %1386 = vmatprep.subr.mxu0 0.0
    %1387 = vmatpush1.msra.mxu0 0.0
    %1388 = vmatprep.subr.mxu0 0.0
    %1389 = vmatpush1.msra.mxu0 0.0
    %1390 = vmatprep.subr.mxu0 0.0
    %1391 = vmatpush1.msra.mxu0 0.0
    %1392 = vmatprep.subr.mxu0 0.0
    %1393 = vmatpush1.msra.mxu0 0.0
    %1394 = vmatprep.subr.mxu0 0.0
    %1395 = vmatpush1.msra.mxu0 0.0
    %1396 = vmatprep.subr.mxu0 0.0
    %1397 = vmatpush1.msra.mxu0 0.0
    %1398 = vmatprep.subr.mxu0 0.0
    %1399 = vmatpush1.msra.mxu0 0.0
    %1400 = vmatprep.subr.mxu0 0.0
    %1401 = vmatpush1.msra.mxu0 0.0
    %1402 = vmatprep.subr.mxu0 0.0
    %1403 = vmatpush1.msra.mxu0 0.0
    %1404 = vmatprep.subr.mxu0 0.0
    %1405 = vmatpush1.msra.mxu0 0.0
    %1406 = vmatprep.subr.mxu0 0.0
    %1407 = vmatpush1.msra.mxu0 0.0
    %1408 = vmatprep.subr.mxu0 0.0
    %1409 = vmatpush1.msra.mxu0 0.0
    %1410 = vmatprep.subr.mxu0 0.0
    %1411 = vmatpush1.msra.mxu0 0.0
    %1412 = vmatprep.subr.mxu0 0.0
    %1413 = vmatpush1.msra.mxu0 0.0
    %1414 = vmatprep.subr.mxu0 0.0
    %1415 = vmatpush1.msra.mxu0 0.0
    %1416 = vmatprep.subr.mxu0 0.0
    %1417 = vmatpush1.msra.mxu0 0.0
    %1418 = vmatprep.subr.mxu0 0.0
    %1419 = vmatpush1.msra.mxu0 0.0
    %1420 = vmatprep.subr.mxu0 0.0
    %1421 = vmatpush1.msra.mxu0 0.0
    %1422 = vmatprep.subr.mxu0 0.0
    %1423 = vmatpush1.msra.mxu0 0.0
    %1424 = vmatprep.subr.mxu0 0.0
    %1425 = vmatpush1.msra.mxu0 0.0
    %1426 = vmatprep.subr.mxu0 0.0
    %1427 = vmatpush1.msra.mxu0 0.0
    %1428 = vmatprep.subr.mxu0 0.0
    %1429 = vmatpush1.msra.mxu0 0.0
    %1430 = vmatprep.subr.mxu0 0.0
    %1431 = vmatpush1.msra.mxu0 0.0
    %1432 = vmatprep.subr.mxu0 0.0
    %1433 = vmatpush1.msra.mxu0 0.0
    %1434 = vmatprep.subr.mxu0 0.0
    %1435 = vmatpush1.msra.mxu0 0.0
    %1436 = vmatprep.subr.mxu0 0.0
    %1437 = vmatpush1.msra.mxu0 0.0
    %1438 = vmatprep.mubr.f32.mxu0 0.0
    %1439 = vmatmul.mubr.f32.gmra.mrb[0].mxu0 %v1372
    %v1440 = vpop.f32.mrb[0].mxu0
    %v1441 = vadd.f32 %v984, %v1440
    %v1442 = vpop.f32.mrb[0].mxu0
    %1443 = vdwg.mxu0
    %v1444 = vmax.f32 %v1441, 0.0
    %v1446 = vsel %vm1001, %v1444, 0
    %1448 = vmatprep.subr.mxu0 0.0
    %1449 = vmatpush1.msra.mxu0 %v997
    %1450 = vmatprep.subr.mxu0 0.0
    %1451 = vmatpush1.msra.mxu0 %v998
    %1452 = vmatprep.subr.mxu0 0.0
    %1453 = vmatpush1.msra.mxu0 %v999
    %1454 = vmatprep.subr.mxu0 0.0
    %1455 = vmatpush1.msra.mxu0 %v1000
    %1456 = vmatprep.subr.mxu0 0.0
    %1457 = vmatpush1.msra.mxu0 0.0
    %1458 = vmatprep.subr.mxu0 0.0
    %1459 = vmatpush1.msra.mxu0 0.0
    %1460 = vmatprep.subr.mxu0 0.0
    %1461 = vmatpush1.msra.mxu0 0.0
    %1462 = vmatprep.subr.mxu0 0.0
    %1463 = vmatpush1.msra.mxu0 0.0
    %1464 = vmatprep.subr.mxu0 0.0
    %1465 = vmatpush1.msra.mxu0 0.0
    %1466 = vmatprep.subr.mxu0 0.0
    %1467 = vmatpush1.msra.mxu0 0.0
    %1468 = vmatprep.subr.mxu0 0.0
    %1469 = vmatpush1.msra.mxu0 0.0
    %1470 = vmatprep.subr.mxu0 0.0
    %1471 = vmatpush1.msra.mxu0 0.0
    %1472 = vmatprep.subr.mxu0 0.0
    %1473 = vmatpush1.msra.mxu0 0.0
    %1474 = vmatprep.subr.mxu0 0.0
    %1475 = vmatpush1.msra.mxu0 0.0
    %1476 = vmatprep.subr.mxu0 0.0
    %1477 = vmatpush1.msra.mxu0 0.0
    %1478 = vmatprep.subr.mxu0 0.0
    %1479 = vmatpush1.msra.mxu0 0.0
    %1480 = vmatprep.subr.mxu0 0.0
    %1481 = vmatpush1.msra.mxu0 0.0
    %1482 = vmatprep.subr.mxu0 0.0
    %1483 = vmatpush1.msra.mxu0 0.0
    %1484 = vmatprep.subr.mxu0 0.0
    %1485 = vmatpush1.msra.mxu0 0.0
    %1486 = vmatprep.subr.mxu0 0.0
    %1487 = vmatpush1.msra.mxu0 0.0
    %1488 = vmatprep.subr.mxu0 0.0
    %1489 = vmatpush1.msra.mxu0 0.0
    %1490 = vmatprep.subr.mxu0 0.0
    %1491 = vmatpush1.msra.mxu0 0.0
    %1492 = vmatprep.subr.mxu0 0.0
    %1493 = vmatpush1.msra.mxu0 0.0
    %1494 = vmatprep.subr.mxu0 0.0
    %1495 = vmatpush1.msra.mxu0 0.0
    %1496 = vmatprep.subr.mxu0 0.0
    %1497 = vmatpush1.msra.mxu0 0.0
    %1498 = vmatprep.subr.mxu0 0.0
    %1499 = vmatpush1.msra.mxu0 0.0
    %1500 = vmatprep.subr.mxu0 0.0
    %1501 = vmatpush1.msra.mxu0 0.0
    %1502 = vmatprep.subr.mxu0 0.0
    %1503 = vmatpush1.msra.mxu0 0.0
    %1504 = vmatprep.subr.mxu0 0.0
    %1505 = vmatpush1.msra.mxu0 0.0
    %1506 = vmatprep.subr.mxu0 0.0
    %1507 = vmatpush1.msra.mxu0 0.0
    %1508 = vmatprep.subr.mxu0 0.0
    %1509 = vmatpush1.msra.mxu0 0.0
    %1510 = vmatprep.subr.mxu0 0.0
    %1511 = vmatpush1.msra.mxu0 0.0
    %1512 = vmatprep.mubr.f32.mxu0 0.0
    %1513 = vmatmul.mubr.f32.gmra.mrb[0].mxu0 %v1446
    %v1514 = vpop.f32.mrb[0].mxu0
    %v1515 = vadd.f32 %v989, %v1514
    %v1516 = vpop.f32.mrb[0].mxu0
    %1517 = vdwg.mxu0
    %v1518 = vmax.f32 %v1515, 0.0
    %v1520 = vsel %vm1001, %v1518, 0
    %1522 = vmatprep.subr.mxu0 0.0
    %1523 = vmatpush1.msra.mxu0 %v997
    %1524 = vmatprep.subr.mxu0 0.0
    %1525 = vmatpush1.msra.mxu0 %v998
    %1526 = vmatprep.subr.mxu0 0.0
    %1527 = vmatpush1.msra.mxu0 %v999
    %1528 = vmatprep.subr.mxu0 0.0
    %1529 = vmatpush1.msra.mxu0 %v1000
    %1530 = vmatprep.subr.mxu0 0.0
    %1531 = vmatpush1.msra.mxu0 0.0
    %1532 = vmatprep.subr.mxu0 0.0
    %1533 = vmatpush1.msra.mxu0 0.0
    %1534 = vmatprep.subr.mxu0 0.0
    %1535 = vmatpush1.msra.mxu0 0.0
    %1536 = vmatprep.subr.mxu0 0.0
    %1537 = vmatpush1.msra.mxu0 0.0
    %1538 = vmatprep.subr.mxu0 0.0
    %1539 = vmatpush1.msra.mxu0 0.0
    %1540 = vmatprep.subr.mxu0 0.0
    %1541 = vmatpush1.msra.mxu0 0.0
    %1542 = vmatprep.subr.mxu0 0.0
    %1543 = vmatpush1.msra.mxu0 0.0
    %1544 = vmatprep.subr.mxu0 0.0
    %1545 = vmatpush1.msra.mxu0 0.0
    %1546 = vmatprep.subr.mxu0 0.0
    %1547 = vmatpush1.msra.mxu0 0.0
    %1548 = vmatprep.subr.mxu0 0.0
    %1549 = vmatpush1.msra.mxu0 0.0
    %1550 = vmatprep.subr.mxu0 0.0
    %1551 = vmatpush1.msra.mxu0 0.0
    %1552 = vmatprep.subr.mxu0 0.0
    %1553 = vmatpush1.msra.mxu0 0.0
    %1554 = vmatprep.subr.mxu0 0.0
    %1555 = vmatpush1.msra.mxu0 0.0
    %1556 = vmatprep.subr.mxu0 0.0
    %1557 = vmatpush1.msra.mxu0 0.0
    %1558 = vmatprep.subr.mxu0 0.0
    %1559 = vmatpush1.msra.mxu0 0.0
    %1560 = vmatprep.subr.mxu0 0.0
    %1561 = vmatpush1.msra.mxu0 0.0
    %1562 = vmatprep.subr.mxu0 0.0
    %1563 = vmatpush1.msra.mxu0 0.0
    %1564 = vmatprep.subr.mxu0 0.0
    %1565 = vmatpush1.msra.mxu0 0.0
    %1566 = vmatprep.subr.mxu0 0.0
    %1567 = vmatpush1.msra.mxu0 0.0
    %1568 = vmatprep.subr.mxu0 0.0
    %1569 = vmatpush1.msra.mxu0 0.0
    %1570 = vmatprep.subr.mxu0 0.0
    %1571 = vmatpush1.msra.mxu0 0.0
    %1572 = vmatprep.subr.mxu0 0.0
    %1573 = vmatpush1.msra.mxu0 0.0
    %1574 = vmatprep.subr.mxu0 0.0
    %1575 = vmatpush1.msra.mxu0 0.0
    %1576 = vmatprep.subr.mxu0 0.0
    %1577 = vmatpush1.msra.mxu0 0.0
    %1578 = vmatprep.subr.mxu0 0.0
    %1579 = vmatpush1.msra.mxu0 0.0
    %1580 = vmatprep.subr.mxu0 0.0
    %1581 = vmatpush1.msra.mxu0 0.0
    %1582 = vmatprep.subr.mxu0 0.0
    %1583 = vmatpush1.msra.mxu0 0.0
    %1584 = vmatprep.subr.mxu0 0.0
    %1585 = vmatpush1.msra.mxu0 0.0
    %1586 = vmatprep.mubr.f32.mxu0 0.0
    %1587 = vmatmul.mubr.f32.gmra.mrb[0].mxu0 %v1520
    %v1588 = vpop.f32.mrb[0].mxu0
    %v1589 = vadd.f32 %v994, %v1588
    %v1590 = vpop.f32.mrb[0].mxu0
    %1591 = vdwg.mxu0
    %v1592 = vmax.f32 %v1589, 0.0
    %v1593 = vld [vmem:[%s6] sm:$0xff]
    %v1594 = vld [vmem:[%s6 + $0x8] sm:$0xff]
    %v1595 = vld [vmem:[%s6 + $0x10] sm:$0xff]
    %v1596 = vld [vmem:[%s6 + $0x18] sm:$0xff]
    %v1597 = vld [vmem:[%s6 + $0x20] sm:$0xff]
    %v1598 = vld [vmem:[%s6 + $0x28] sm:$0xff]
    %v1599 = vld [vmem:[%s6 + $0x30] sm:$0xff]
    %v1600 = vld [vmem:[%s6 + $0x38] sm:$0xff]
    %v1601 = vld [vmem:[%s7] sm:$0x1]
    %v1603 = vlaneseq
    %v1604 = vshrl.u32 %v1603, 7
    %v1605 = vsub.s32 0, %v1604
    %v1606 = vrot.slane %v1601, %v1605
    %1608 = vmatprep.subr.mxu0 0.0
    %1609 = vmatpush1.msra.mxu0 %v1593
    %1610 = vmatprep.subr.mxu0 0.0
    %1611 = vmatpush1.msra.mxu0 %v1594
    %1612 = vmatprep.subr.mxu0 0.0
    %1613 = vmatpush1.msra.mxu0 %v1595
    %1614 = vmatprep.subr.mxu0 0.0
    %1615 = vmatpush1.msra.mxu0 %v1596
    %1616 = vmatprep.subr.mxu0 0.0
    %1617 = vmatpush1.msra.mxu0 %v1597
    %1618 = vmatprep.subr.mxu0 0.0
    %1619 = vmatpush1.msra.mxu0 %v1598
    %1620 = vmatprep.subr.mxu0 0.0
    %1621 = vmatpush1.msra.mxu0 %v1599
    %1622 = vmatprep.subr.mxu0 0.0
    %1623 = vmatpush1.msra.mxu0 %v1600
    %1624 = vmatprep.subr.mxu0 0.0
    %1625 = vmatpush1.msra.mxu0 0.0
    %1626 = vmatprep.subr.mxu0 0.0
    %1627 = vmatpush1.msra.mxu0 0.0
    %1628 = vmatprep.subr.mxu0 0.0
    %1629 = vmatpush1.msra.mxu0 0.0
    %1630 = vmatprep.subr.mxu0 0.0
    %1631 = vmatpush1.msra.mxu0 0.0
    %1632 = vmatprep.subr.mxu0 0.0
    %1633 = vmatpush1.msra.mxu0 0.0
    %1634 = vmatprep.subr.mxu0 0.0
    %1635 = vmatpush1.msra.mxu0 0.0
    %1636 = vmatprep.subr.mxu0 0.0
    %1637 = vmatpush1.msra.mxu0 0.0
    %1638 = vmatprep.subr.mxu0 0.0
    %1639 = vmatpush1.msra.mxu0 0.0
    %1640 = vmatprep.subr.mxu0 0.0
    %1641 = vmatpush1.msra.mxu0 0.0
    %1642 = vmatprep.subr.mxu0 0.0
    %1643 = vmatpush1.msra.mxu0 0.0
    %1644 = vmatprep.subr.mxu0 0.0
    %1645 = vmatpush1.msra.mxu0 0.0
    %1646 = vmatprep.subr.mxu0 0.0
    %1647 = vmatpush1.msra.mxu0 0.0
    %1648 = vmatprep.subr.mxu0 0.0
    %1649 = vmatpush1.msra.mxu0 0.0
    %1650 = vmatprep.subr.mxu0 0.0
    %1651 = vmatpush1.msra.mxu0 0.0
    %1652 = vmatprep.subr.mxu0 0.0
    %1653 = vmatpush1.msra.mxu0 0.0
    %1654 = vmatprep.subr.mxu0 0.0
    %1655 = vmatpush1.msra.mxu0 0.0
    %1656 = vmatprep.subr.mxu0 0.0
    %1657 = vmatpush1.msra.mxu0 0.0
    %1658 = vmatprep.subr.mxu0 0.0
    %1659 = vmatpush1.msra.mxu0 0.0
    %1660 = vmatprep.subr.mxu0 0.0
    %1661 = vmatpush1.msra.mxu0 0.0
    %1662 = vmatprep.subr.mxu0 0.0
    %1663 = vmatpush1.msra.mxu0 0.0
    %1664 = vmatprep.subr.mxu0 0.0
    %1665 = vmatpush1.msra.mxu0 0.0
    %1666 = vmatprep.subr.mxu0 0.0
    %1667 = vmatpush1.msra.mxu0 0.0
    %1668 = vmatprep.subr.mxu0 0.0
    %1669 = vmatpush1.msra.mxu0 0.0
    %1670 = vmatprep.subr.mxu0 0.0
    %1671 = vmatpush1.msra.mxu0 0.0
    %1672 = vmatprep.mubr.f32.mxu0 0.0
    %1673 = vmatmul.mubr.f32.gmra.mrb[0].mxu0 %v890
    %v1674 = vpop.f32.mrb[0].mxu0
    %v1675 = vadd.f32 %v1606, %v1674
    %v1676 = vpop.f32.mrb[0].mxu0
    %1677 = vdwg.mxu0
    %v1678 = vmax.f32 %v1675, 0.0
    %v1679 = vld [vmem:[%s9] sm:$0xff]
    %v1680 = vld [vmem:[%s9 + $0x8] sm:$0xff]
    %v1681 = vld [vmem:[%s9 + $0x10] sm:$0xff]
    %v1682 = vld [vmem:[%s9 + $0x18] sm:$0xff]
    %v1683 = vld [vmem:[%s9 + $0x20] sm:$0xff]
    %v1684 = vld [vmem:[%s9 + $0x28] sm:$0xff]
    %v1685 = vld [vmem:[%s9 + $0x30] sm:$0xff]
    %v1686 = vld [vmem:[%s9 + $0x38] sm:$0xff]
    %v1687 = vld [vmem:[#allocation7] sm:$0xff]
    %v1688 = vld [vmem:[#allocation7 + $0x8] sm:$0xff]
    %v1689 = vld [vmem:[#allocation7 + $0x10] sm:$0xff]
    %v1690 = vld [vmem:[#allocation7 + $0x18] sm:$0xff]
    %v1691 = vld [vmem:[#allocation7 + $0x20] sm:$0xff]
    %v1692 = vld [vmem:[#allocation7 + $0x28] sm:$0xff]
    %v1693 = vld [vmem:[#allocation7 + $0x30] sm:$0xff]
    %v1694 = vld [vmem:[#allocation7 + $0x38] sm:$0xff]
    %v1696 = vsel %vm1001, %v1678, 0
    %1698 = vmatprep.subr.mxu0 %v1688
    %1699 = vmatpush1.msra.mxu0 %v1687
    %1700 = vmatprep.subr.mxu0 %v1690
    %1701 = vmatpush1.msra.mxu0 %v1689
    %1702 = vmatprep.subr.mxu0 %v1692
    %1703 = vmatpush1.msra.mxu0 %v1691
    %1704 = vmatprep.subr.mxu0 %v1694
    %1705 = vmatpush1.msra.mxu0 %v1693
    %1706 = vmatprep.subr.mxu0 0.0
    %1707 = vmatpush1.msra.mxu0 0.0
    %1708 = vmatprep.subr.mxu0 0.0
    %1709 = vmatpush1.msra.mxu0 0.0
    %1710 = vmatprep.subr.mxu0 0.0
    %1711 = vmatpush1.msra.mxu0 0.0
    %1712 = vmatprep.subr.mxu0 0.0
    %1713 = vmatpush1.msra.mxu0 0.0
    %1714 = vmatprep.subr.mxu0 0.0
    %1715 = vmatpush1.msra.mxu0 0.0
    %1716 = vmatprep.subr.mxu0 0.0
    %1717 = vmatpush1.msra.mxu0 0.0
    %1718 = vmatprep.subr.mxu0 0.0
    %1719 = vmatpush1.msra.mxu0 0.0
    %1720 = vmatprep.subr.mxu0 0.0
    %1721 = vmatpush1.msra.mxu0 0.0
    %1722 = vmatprep.subr.mxu0 0.0
    %1723 = vmatpush1.msra.mxu0 0.0
    %1724 = vmatprep.subr.mxu0 0.0
    %1725 = vmatpush1.msra.mxu0 0.0
    %1726 = vmatprep.subr.mxu0 0.0
    %1727 = vmatpush1.msra.mxu0 0.0
    %1728 = vmatprep.subr.mxu0 0.0
    %1729 = vmatpush1.msra.mxu0 0.0
    %1730 = vmatprep.subr.mxu0 0.0
    %1731 = vmatpush1.msra.mxu0 0.0
    %1732 = vmatprep.subr.mxu0 0.0
    %1733 = vmatpush1.msra.mxu0 0.0
    %1734 = vmatprep.subr.mxu0 0.0
    %1735 = vmatpush1.msra.mxu0 0.0
    %1736 = vmatprep.subr.mxu0 0.0
    %1737 = vmatpush1.msra.mxu0 0.0
    %1738 = vmatprep.subr.mxu0 0.0
    %1739 = vmatpush1.msra.mxu0 0.0
    %1740 = vmatprep.subr.mxu0 0.0
    %1741 = vmatpush1.msra.mxu0 0.0
    %1742 = vmatprep.subr.mxu0 0.0
    %1743 = vmatpush1.msra.mxu0 0.0
    %1744 = vmatprep.subr.mxu0 0.0
    %1745 = vmatpush1.msra.mxu0 0.0
    %1746 = vmatprep.subr.mxu0 0.0
    %1747 = vmatpush1.msra.mxu0 0.0
    %1748 = vmatprep.subr.mxu0 0.0
    %1749 = vmatpush1.msra.mxu0 0.0
    %1750 = vmatprep.subr.mxu0 0.0
    %1751 = vmatpush1.msra.mxu0 0.0
    %1752 = vmatprep.subr.mxu0 0.0
    %1753 = vmatpush1.msra.mxu0 0.0
    %1754 = vmatprep.subr.mxu0 0.0
    %1755 = vmatpush1.msra.mxu0 0.0
    %1756 = vmatprep.subr.mxu0 0.0
    %1757 = vmatpush1.msra.mxu0 0.0
    %1758 = vmatprep.subr.mxu0 0.0
    %1759 = vmatpush1.msra.mxu0 0.0
    %1760 = vmatprep.subr.mxu0 0.0
    %1761 = vmatpush1.msra.mxu0 0.0
    %1762 = vmatprep.mubr.f32.mxu0 0.0
    %1763 = vmatmul.mubr.f32.gmra.mrb[0].mxu0 %v1696
    %v1764 = vpop.f32.mrb[0].mxu0
    %v1765 = vadd.f32 0.0, %v1764
    %v1766 = vpop.f32.mrb[0].mxu0
    %v1767 = vadd.f32 0.0, %v1766
    %1768 = vdwg.mxu0
    %v1770 = vsel %vm1001, %v1592, 0
    %1772 = vmatprep.subr.mxu0 %v1680
    %1773 = vmatpush1.msra.mxu0 %v1679
    %1774 = vmatprep.subr.mxu0 %v1682
    %1775 = vmatpush1.msra.mxu0 %v1681
    %1776 = vmatprep.subr.mxu0 %v1684
    %1777 = vmatpush1.msra.mxu0 %v1683
    %1778 = vmatprep.subr.mxu0 %v1686
    %1779 = vmatpush1.msra.mxu0 %v1685
    %1780 = vmatprep.subr.mxu0 0.0
    %1781 = vmatpush1.msra.mxu0 0.0
    %1782 = vmatprep.subr.mxu0 0.0
    %1783 = vmatpush1.msra.mxu0 0.0
    %1784 = vmatprep.subr.mxu0 0.0
    %1785 = vmatpush1.msra.mxu0 0.0
    %1786 = vmatprep.subr.mxu0 0.0
    %1787 = vmatpush1.msra.mxu0 0.0
    %1788 = vmatprep.subr.mxu0 0.0
    %1789 = vmatpush1.msra.mxu0 0.0
    %1790 = vmatprep.subr.mxu0 0.0
    %1791 = vmatpush1.msra.mxu0 0.0
    %1792 = vmatprep.subr.mxu0 0.0
    %1793 = vmatpush1.msra.mxu0 0.0
    %1794 = vmatprep.subr.mxu0 0.0
    %1795 = vmatpush1.msra.mxu0 0.0
    %1796 = vmatprep.subr.mxu0 0.0
    %1797 = vmatpush1.msra.mxu0 0.0
    %1798 = vmatprep.subr.mxu0 0.0
    %1799 = vmatpush1.msra.mxu0 0.0
    %1800 = vmatprep.subr.mxu0 0.0
    %1801 = vmatpush1.msra.mxu0 0.0
    %1802 = vmatprep.subr.mxu0 0.0
    %1803 = vmatpush1.msra.mxu0 0.0
    %1804 = vmatprep.subr.mxu0 0.0
    %1805 = vmatpush1.msra.mxu0 0.0
    %1806 = vmatprep.subr.mxu0 0.0
    %1807 = vmatpush1.msra.mxu0 0.0
    %1808 = vmatprep.subr.mxu0 0.0
    %1809 = vmatpush1.msra.mxu0 0.0
    %1810 = vmatprep.subr.mxu0 0.0
    %1811 = vmatpush1.msra.mxu0 0.0
    %1812 = vmatprep.subr.mxu0 0.0
    %1813 = vmatpush1.msra.mxu0 0.0
    %1814 = vmatprep.subr.mxu0 0.0
    %1815 = vmatpush1.msra.mxu0 0.0
    %1816 = vmatprep.subr.mxu0 0.0
    %1817 = vmatpush1.msra.mxu0 0.0
    %1818 = vmatprep.subr.mxu0 0.0
    %1819 = vmatpush1.msra.mxu0 0.0
    %1820 = vmatprep.subr.mxu0 0.0
    %1821 = vmatpush1.msra.mxu0 0.0
    %1822 = vmatprep.subr.mxu0 0.0
    %1823 = vmatpush1.msra.mxu0 0.0
    %1824 = vmatprep.subr.mxu0 0.0
    %1825 = vmatpush1.msra.mxu0 0.0
    %1826 = vmatprep.subr.mxu0 0.0
    %1827 = vmatpush1.msra.mxu0 0.0
    %1828 = vmatprep.subr.mxu0 0.0
    %1829 = vmatpush1.msra.mxu0 0.0
    %1830 = vmatprep.subr.mxu0 0.0
    %1831 = vmatpush1.msra.mxu0 0.0
    %1832 = vmatprep.subr.mxu0 0.0
    %1833 = vmatpush1.msra.mxu0 0.0
    %1834 = vmatprep.subr.mxu0 0.0
    %1835 = vmatpush1.msra.mxu0 0.0
    %1836 = vmatprep.mubr.f32.mxu0 0.0
    %1837 = vmatmul.mubr.f32.gmra.mrb[0].mxu0 %v1770
    %v1838 = vpop.f32.mrb[0].mxu0
    %v1839 = vadd.f32 %v1765, %v1838
    %v1840 = vpop.f32.mrb[0].mxu0
    %v1841 = vadd.f32 %v1767, %v1840
    %1842 = vdwg.mxu0
    %v1843 = vld [vmem:[%s11] sm:$0x3]
    %v1845 = vlaneseq
    %v1846 = vshrl.u32 %v1845, 7
    %v1847 = vsub.s32 0, %v1846
    %v1848 = vrot.slane %v1843, %v1847
    %v1849 = vlaneseq
    %v1850 = vshrl.u32 %v1849, 7
    %v1851 = vsub.s32 1, %v1850
    %v1852 = vrot.slane %v1843, %v1851
    %v1855 = vadd.f32 %v1839, %v1848
    %v1856 = vadd.f32 %v1841, %v1852
    %vm1857 = vcmp.gt.f32.partialorder %v1856, 20.0
    %v1858 = vmin.f32 %v1856, 20.0
    %v1859 = vmul.f32 %v1858, 1.442695
    %v1860 = vpow.pop %v1859
    %v1861 = vadd.f32 %v1860, 1.0
    %v1862 = vlog2.pop %v1861
    %v1863 = vmul.f32 %v1862, 0.6931472
    %v1864 = vmul.f32 -0.5, %v1860
    %v1865 = vadd.f32 %v1864, 1.0
    %v1866 = vmul.f32 %v1865, %v1860
    %v1867 = vand.u32 2147483647, %v1860
    %vm1868 = vcmp.lt.f32.partialorder %v1867, 0.0004427343
    %v1869 = vsel %vm1868, %v1866, %v1863
    %v1870 = vsel %vm1857, %v1856, %v1869
    %v1871 = vadd.f32 %v1870, 0.0001
    %1872 = vst [vmem:[#allocation8] sm:$0xff] %v1855
    %1873 = vst [vmem:[#allocation9] sm:$0xff] %v1871
    // Predicated region
    $region62: #{tpu_custom_call.1} parent=1 // pred_check
      _
    $region63: #{tpu_custom_call.1} parent=1 // pred_check_branch
      %1875 = sbr.rel (0) target = $region65
    $region64: #{tpu_custom_call.1} parent=1 // pred_region
      %s1877 = ssub.s32 128, 128
      %1878 = vsyncadd [#allocation4], %s1877
      %s1880 = sshll.u32 [#allocation8], 4
      %s1881 = int_to_ptr.vmem [resolvable:$true] %s1880
      %1883 = dma.vmem_to_hbm [thread:$0]  %s1881, 128, %s12, [#allocation4]
    $region65: #{tpu_custom_call.1} parent=1 // pred_fallthru
      _
    // Predicated region
    $region66: #{tpu_custom_call.1} parent=1 // pred_check
      _
    $region67: #{tpu_custom_call.1} parent=1 // pred_check_branch
      %1885 = sbr.rel (0) target = $region69
    $region68: #{tpu_custom_call.1} parent=1 // pred_region
      %s1887 = ssub.s32 128, 128
      %1888 = vsyncadd [#allocation10], %s1887
      %s1890 = sshll.u32 [#allocation9], 4
      %s1891 = int_to_ptr.vmem [resolvable:$true] %s1890
      %1893 = dma.vmem_to_hbm [thread:$0]  %s1891, 128, %s13, [#allocation10]
    $region69: #{tpu_custom_call.1} parent=1 // pred_fallthru
      _
    // Predicated region
    $region70: #{tpu_custom_call.1} parent=1 // pred_check
      _
    $region71: #{tpu_custom_call.1} parent=1 // pred_check_branch
      %1895 = sbr.rel (0) target = $region73
    $region72: #{tpu_custom_call.1} parent=1 // pred_region
      %1896 = dma.done [#allocation4], 128
    $region73: #{tpu_custom_call.1} parent=1 // pred_fallthru
      _
    // Predicated region
    $region74: #{tpu_custom_call.1} parent=1 // pred_check
      _
    $region75: #{tpu_custom_call.1} parent=1 // pred_check_branch
      %1898 = sbr.rel (0) target = $region77
    $region76: #{tpu_custom_call.1} parent=1 // pred_region
      %1899 = dma.done [#allocation10], 128
    $region77: #{tpu_custom_call.1} parent=1 // pred_fallthru
      _
    %1900 = vsyncpa [#allocation3], 1
    %1901 = vsyncpa [#allocation6], 1
    %1902 = vsyncpa [#allocation4], 1
    %1903 = vsyncpa [#allocation10], 1

</llo_original>
